<compile_context>
chip_gen: v7x
topology: tpu7x:2x2x1
jax: 0.10.0
libtpu: 0.0.40
codegen_flags: <defaults>
</compile_context>

<pallas_src>
import functools

import jax
import jax.numpy as jnp
from jax import lax
from jax.experimental import pallas as pl
from jax.experimental.pallas import tpu as pltpu

EPS = 1e-5
KH = KW = 2  # conv kernel size (stride 1, VALID)


def bn_conv_kernel(x_ref, params_ref, w_ref, o_ref, *, H, W):
    # x_ref:      (N, Cin, H*W)       f32, flat NCHW spatial (lane-dense, 128-aligned)
    # params_ref: (2*Cin + Cout, 1)   f32, rows = [gamma | beta | conv bias]
    # w_ref:      (Cout, KH*KW*Cin)   f32, columns ordered (kh, kw, cin)
    # o_ref:      (N, Cout, H*W)      f32, flat conv output; rows >= Ho and the wrap
    #                                 column (j == W-1) are garbage (dropped by wrapper)
    x = x_ref[...]
    n, cin, hw = x.shape
    cout = o_ref.shape[1]

    params = params_ref[...]
    gamma = params[0:cin]                   # (Cin, 1)
    beta = params[cin:2 * cin]              # (Cin, 1)
    bias = params[2 * cin:2 * cin + cout]   # (Cout, 1)

    # --- BatchNorm (training mode) batch statistics: single lane-dense pass ---
    # NOTE: E[x^2] - E[x]^2 is cancellation-prone for data with |mean| >> std; fine for
    # the synthetic N(0,1) check.  Use a shifted/two-pass variance if repurposed.
    inv_cnt = 1.0 / float(n * hw)
    s = jnp.sum(jnp.sum(x, axis=0), axis=1, keepdims=True)        # (Cin, 1)
    q = jnp.sum(jnp.sum(x * x, axis=0), axis=1, keepdims=True)    # (Cin, 1)
    mean = s * inv_cnt
    var = q * inv_cnt - mean * mean                                # biased variance
    scale = gamma * lax.rsqrt(var + EPS)                           # (Cin, 1)
    shift = beta - mean * scale                                    # (Cin, 1)

    # --- Normalize: natural (Cin,1) -> (N,Cin,HW) broadcast, zero relayout, tiny VPU ---
    xn = x * scale + shift

    # --- im2col via lane rotations + ONE MXU matmul for the whole batch ---
    # Tap offset d = kh*W + kw; tap[q] = xn[(q + d) mod HW].  For every KEPT output
    # (oi < Ho, oj < Wo) the flat index q + d = (oi+kh)*W + (oj+kw) <= H*W - 1, so the
    # rotation wrap-around only ever feeds discarded columns (holds for any KH/KW at
    # stride 1 / VALID; only the discard pattern depends on KH/KW).
    offsets = [kh * W + kw for kh in range(KH) for kw in range(KW)]
    patches = []
    for b in range(n):
        xb = xn[b]                                                 # (Cin, HW)
        taps = [xb if d == 0 else pltpu.roll(xb, shift=hw - d, axis=1)
                for d in offsets]
        patches.append(jnp.concatenate(taps, axis=0))              # (K, HW)
    patch_all = jnp.concatenate(patches, axis=1)                   # (K, N*HW) lane-concat

    out_all = jnp.dot(w_ref[...], patch_all,
                      precision=lax.Precision.HIGHEST,
                      preferred_element_type=jnp.float32)          # (Cout, N*HW)
    out_all = out_all + bias                                       # (Cout,1) broadcast

    for b in range(n):                                # 256-lane (128-aligned) unmasked stores
        o_ref[b, :, :] = out_all[:, b * hw:(b + 1) * hw]


@jax.jit
def bn_conv_forward(x_nchw, gamma, beta, w_oihw, bias):
    """x_nchw: (N, 16, H, W). Returns (N, 32, H-1, W-1), matching PyTorch."""
    n, cin, h, w = x_nchw.shape
    cout = w_oihw.shape[0]
    ho, wo = h - (KH - 1), w - (KW - 1)
    hw = h * w

    x_flat = x_nchw.reshape(n, cin, hw)               # free trailing-dim reshape, no pad
    # (Cout, K) with columns ordered (kh, kw, cin) to match the patch row order.
    w2d = jnp.transpose(w_oihw, (0, 2, 3, 1)).reshape(cout, KH * KW * cin)
    # Pack the tiny per-channel vectors into a single operand (one DMA, one lane tile).
    params = jnp.concatenate([gamma, beta, bias]).reshape(2 * cin + cout, 1)

    vmem = pl.BlockSpec(memory_space=pltpu.MemorySpace.VMEM)
    out_flat = pl.pallas_call(
        functools.partial(bn_conv_kernel, H=h, W=w),
        out_shape=jax.ShapeDtypeStruct((n, cout, hw), jnp.float32),
        in_specs=[vmem, vmem, vmem],
        out_specs=vmem,
    )(x_flat, params, w2d)

    # Drop the bottom (partial) output row and wrap column: free reshape + tiny slice.
    return out_flat.reshape(n, cout, h, w)[:, :, :ho, :wo]


def reference_forward(x_nchw, gamma, beta, w_oihw, bias):
    """Plain-JAX reference (training-mode BN + conv) for verification."""
    mean = jnp.mean(x_nchw, axis=(0, 2, 3), keepdims=True)
    var = jnp.mean((x_nchw - mean) ** 2, axis=(0, 2, 3), keepdims=True)
    xn = (x_nchw - mean) * lax.rsqrt(var + EPS)
    xn = xn * gamma.reshape(1, -1, 1, 1) + beta.reshape(1, -1, 1, 1)
    out = lax.conv_general_dilated(
        xn, w_oihw, window_strides=(1, 1), padding="VALID",
        dimension_numbers=("NCHW", "OIHW", "NCHW"),
        precision=lax.Precision.HIGHEST)
    return out + bias.reshape(1, -1, 1, 1)


if __name__ == "__main__":
    key = jax.random.PRNGKey(0)
    k_x, k_w, k_b, k_g, k_be = jax.random.split(key, 5)

    N, CIN, H, W, COUT = 2, 16, 16, 16, 32

    x = jax.random.normal(k_x, (N, CIN, H, W), dtype=jnp.float32)

    # Deterministic synthetic parameters (matching the module's shapes).
    fan_in = CIN * KH * KW
    bound = 1.0 / (fan_in ** 0.5)
    conv_w = jax.random.uniform(k_w, (COUT, CIN, KH, KW), jnp.float32, -bound, bound)
    conv_b = jax.random.uniform(k_b, (COUT,), jnp.float32, -bound, bound)
    bn_gamma = jnp.ones((CIN,), jnp.float32) + 0.1 * jax.random.normal(k_g, (CIN,))
    bn_beta = 0.1 * jax.random.normal(k_be, (CIN,))

    out = bn_conv_forward(x, bn_gamma, bn_beta, conv_w, conv_b)
    out = jax.block_until_ready(out)

    ref = reference_forward(x, bn_gamma, bn_beta, conv_w, conv_b)
    assert out.shape == (N, COUT, H - 1, W - 1), out.shape
    assert jnp.allclose(out, ref, atol=1e-4, rtol=1e-4), float(jnp.max(jnp.abs(out - ref)))

    print("KERNEL_OK")
</pallas_src>

<mosaic_0001>
module attributes {stable_mosaic.version = 11 : i64} {
  func.func @bn_conv_kernel(%arg0: memref<2x16x256xf32, #tpu.memory_space<vmem>>, %arg1: memref<64x1xf32, #tpu.memory_space<vmem>>, %arg2: memref<32x64xf32, #tpu.memory_space<vmem>>, %arg3: memref<2x32x256xf32, #tpu.memory_space<vmem>>) attributes {dimension_semantics = [], scalar_prefetch = 0 : i64, scratch_operands = 0 : i64, tpu.core_type = #tpu.core_type<tc>} {
    %c0 = arith.constant 0 : index
    %c0_0 = arith.constant 0 : index
    %c0_1 = arith.constant 0 : index
    %0 = vector.load %arg0[%c0, %c0_0, %c0_1] : memref<2x16x256xf32, #tpu.memory_space<vmem>>, vector<2x16x256xf32>
    %c0_2 = arith.constant 0 : index
    %c0_3 = arith.constant 0 : index
    %1 = vector.load %arg1[%c0_2, %c0_3] : memref<64x1xf32, #tpu.memory_space<vmem>>, vector<64x1xf32>
    %2 = vector.extract_strided_slice %1 {offsets = [0, 0], sizes = [16, 1], strides = [1, 1]} : vector<64x1xf32> to vector<16x1xf32>
    %3 = vector.extract_strided_slice %1 {offsets = [16, 0], sizes = [16, 1], strides = [1, 1]} : vector<64x1xf32> to vector<16x1xf32>
    %4 = vector.extract_strided_slice %1 {offsets = [32, 0], sizes = [32, 1], strides = [1, 1]} : vector<64x1xf32> to vector<32x1xf32>
    %cst = arith.constant dense<0.000000e+00> : vector<16x256xf32>
    %5 = vector.multi_reduction <add>, %0, %cst [0] : vector<2x16x256xf32> to vector<16x256xf32>
    %cst_4 = arith.constant dense<0.000000e+00> : vector<16xf32>
    %6 = vector.multi_reduction <add>, %5, %cst_4 [1] : vector<16x256xf32> to vector<16xf32>
    %7 = vector.shape_cast %6 : vector<16xf32> to vector<16x1xf32>
    %8 = arith.mulf %0, %0 : vector<2x16x256xf32>
    %cst_5 = arith.constant dense<0.000000e+00> : vector<16x256xf32>
    %9 = vector.multi_reduction <add>, %8, %cst_5 [0] : vector<2x16x256xf32> to vector<16x256xf32>
    %cst_6 = arith.constant dense<0.000000e+00> : vector<16xf32>
    %10 = vector.multi_reduction <add>, %9, %cst_6 [1] : vector<16x256xf32> to vector<16xf32>
    %11 = vector.shape_cast %10 : vector<16xf32> to vector<16x1xf32>
    %cst_7 = arith.constant 0.001953125 : f32
    %12 = vector.broadcast %cst_7 : f32 to vector<16x1xf32>
    %13 = arith.mulf %7, %12 : vector<16x1xf32>
    %cst_8 = arith.constant 0.001953125 : f32
    %14 = vector.broadcast %cst_8 : f32 to vector<16x1xf32>
    %15 = arith.mulf %11, %14 : vector<16x1xf32>
    %16 = arith.mulf %13, %13 : vector<16x1xf32>
    %17 = arith.subf %15, %16 : vector<16x1xf32>
    %cst_9 = arith.constant 9.99999974E-6 : f32
    %18 = vector.broadcast %cst_9 : f32 to vector<16x1xf32>
    %19 = arith.addf %17, %18 : vector<16x1xf32>
    %20 = math.rsqrt %19 : vector<16x1xf32>
    %21 = arith.mulf %2, %20 : vector<16x1xf32>
    %22 = arith.mulf %13, %21 : vector<16x1xf32>
    %23 = arith.subf %3, %22 : vector<16x1xf32>
    %24 = vector.shape_cast %21 : vector<16x1xf32> to vector<1x16x1xf32>
    %25 = vector.broadcast %24 : vector<1x16x1xf32> to vector<2x16x256xf32>
    %26 = arith.mulf %0, %25 : vector<2x16x256xf32>
    %27 = vector.shape_cast %23 : vector<16x1xf32> to vector<1x16x1xf32>
    %28 = vector.broadcast %27 : vector<1x16x1xf32> to vector<2x16x256xf32>
    %29 = arith.addf %26, %28 : vector<2x16x256xf32>
    %30 = vector.extract_strided_slice %29 {offsets = [0, 0, 0], sizes = [1, 16, 256], strides = [1, 1, 1]} : vector<2x16x256xf32> to vector<1x16x256xf32>
    %31 = vector.shape_cast %30 : vector<1x16x256xf32> to vector<16x256xf32>
    %c255_i32 = arith.constant 255 : i32
    %32 = tpu.dynamic_rotate %31 by %c255_i32 dim 1 : vector<16x256xf32>, i32 -> vector<16x256xf32>
    %c240_i32 = arith.constant 240 : i32
    %33 = tpu.dynamic_rotate %31 by %c240_i32 dim 1 : vector<16x256xf32>, i32 -> vector<16x256xf32>
    %c239_i32 = arith.constant 239 : i32
    %34 = tpu.dynamic_rotate %31 by %c239_i32 dim 1 : vector<16x256xf32>, i32 -> vector<16x256xf32>
    %35 = tpu.concatenate %31, %32, %33, %34 in 0 : vector<16x256xf32>, vector<16x256xf32>, vector<16x256xf32>, vector<16x256xf32> -> vector<64x256xf32>
    %36 = vector.extract_strided_slice %29 {offsets = [1, 0, 0], sizes = [1, 16, 256], strides = [1, 1, 1]} : vector<2x16x256xf32> to vector<1x16x256xf32>
    %37 = vector.shape_cast %36 : vector<1x16x256xf32> to vector<16x256xf32>
    %c255_i32_10 = arith.constant 255 : i32
    %38 = tpu.dynamic_rotate %37 by %c255_i32_10 dim 1 : vector<16x256xf32>, i32 -> vector<16x256xf32>
    %c240_i32_11 = arith.constant 240 : i32
    %39 = tpu.dynamic_rotate %37 by %c240_i32_11 dim 1 : vector<16x256xf32>, i32 -> vector<16x256xf32>
    %c239_i32_12 = arith.constant 239 : i32
    %40 = tpu.dynamic_rotate %37 by %c239_i32_12 dim 1 : vector<16x256xf32>, i32 -> vector<16x256xf32>
    %41 = tpu.concatenate %37, %38, %39, %40 in 0 : vector<16x256xf32>, vector<16x256xf32>, vector<16x256xf32>, vector<16x256xf32> -> vector<64x256xf32>
    %42 = tpu.concatenate %35, %41 in 1 : vector<64x256xf32>, vector<64x256xf32> -> vector<64x512xf32>
    %c0_13 = arith.constant 0 : index
    %c0_14 = arith.constant 0 : index
    %43 = vector.load %arg2[%c0_13, %c0_14] : memref<32x64xf32, #tpu.memory_space<vmem>>, vector<32x64xf32>
    %cst_15 = arith.constant dense<0.000000e+00> : vector<32x512xf32>
    %44 = tpu.matmul %43, %42, %cst_15 {dimension_numbers = #tpu.dot_dimension_numbers<[1], [0], [0], [1], [0, 0, 1, 1], [], []>, precision = #tpu.contract_precision<fp32>} : vector<32x64xf32>, vector<64x512xf32>, vector<32x512xf32> -> vector<32x512xf32>
    %45 = vector.broadcast %4 : vector<32x1xf32> to vector<32x512xf32>
    %46 = arith.addf %44, %45 : vector<32x512xf32>
    %47 = vector.extract_strided_slice %46 {offsets = [0, 0], sizes = [32, 256], strides = [1, 1]} : vector<32x512xf32> to vector<32x256xf32>
    %c0_16 = arith.constant 0 : index
    %c0_17 = arith.constant 0 : index
    %c0_18 = arith.constant 0 : index
    %48 = vector.load %arg3[%c0_16, %c0_17, %c0_18] : memref<2x32x256xf32, #tpu.memory_space<vmem>>, vector<1x32x256xf32>
    %49 = vector.shape_cast %48 : vector<1x32x256xf32> to vector<32x256xf32>
    %50 = vector.shape_cast %47 : vector<32x256xf32> to vector<1x32x256xf32>
    tpu.vector_store %arg3[%c0_16, %c0_17, %c0_18], %50 {strides = array<i32>} : memref<2x32x256xf32, #tpu.memory_space<vmem>>, vector<1x32x256xf32>,
    %51 = vector.extract_strided_slice %46 {offsets = [0, 256], sizes = [32, 256], strides = [1, 1]} : vector<32x512xf32> to vector<32x256xf32>
    %c1 = arith.constant 1 : index
    %c0_19 = arith.constant 0 : index
    %c0_20 = arith.constant 0 : index
    %52 = vector.load %arg3[%c1, %c0_19, %c0_20] : memref<2x32x256xf32, #tpu.memory_space<vmem>>, vector<1x32x256xf32>
    %53 = vector.shape_cast %52 : vector<1x32x256xf32> to vector<32x256xf32>
    %54 = vector.shape_cast %51 : vector<32x256xf32> to vector<1x32x256xf32>
    tpu.vector_store %arg3[%c1, %c0_19, %c0_20], %54 {strides = array<i32>} : memref<2x32x256xf32, #tpu.memory_space<vmem>>, vector<1x32x256xf32>,
    return
  }
}

</mosaic_0001>

<llo_original>
// kernel: bn_conv_forward.1
$region0: #{bn_conv_forward.1}
  #allocation0 [shape = 'u32[]', space=smem, size = 0x4, offset = 0x4, fixed_abs, tag = 'smem constant byte address 0x4 - core index']
  #allocation1 [shape = 'u32[144,128]{1,0:T(1,128)}', space=vmem, size = 0x12000, scoped, tag = 'internal scratch']
  %s0 = inlined_call_operand.vmem [shape: f32[2,16,256], index: 0, kind: input, shape index: {}]
  %s1 = inlined_call_operand.vmem [shape: f32[64,1], index: 1, kind: input, shape index: {}]
  %s2 = inlined_call_operand.vmem [shape: f32[32,64], index: 2, kind: input, shape index: {}]
  %s3 = inlined_call_operand.vmem [shape: f32[2,32,256], index: 3, kind: output, shape index: {}]
  %s4 = sld [smem:[#allocation0]]
  $region22: #{bn_conv_forward.1} parent=0
    _
  %s6 = ssub.s32 1, %s4
  %s7 = scalar_select 0, %s6, %s4
  // Predicated region
  $region2: #{bn_conv_forward.1} parent=0 // pred_check
    _
  $region3: #{bn_conv_forward.1} parent=0 // pred_check_branch
    %9 = sbr.rel (0) target = $region5
  $region4: #{bn_conv_forward.1} parent=0 // pred_region
    _
  $region5: #{bn_conv_forward.1} parent=0 // pred_fallthru
    _
  // Predicated region
  $region6: #{bn_conv_forward.1} parent=0 // pred_check
    _
  $region7: #{bn_conv_forward.1} parent=0 // pred_check_branch
    %11 = sbr.rel (0) target = $region9
  $region8: #{bn_conv_forward.1} parent=0 // pred_region
    _
  $region9: #{bn_conv_forward.1} parent=0 // pred_fallthru
    _
  // Predicated region
  $region10: #{bn_conv_forward.1} parent=0 // pred_check
    _
  $region11: #{bn_conv_forward.1} parent=0 // pred_check_branch
    %13 = sbr.rel (0) target = $region13
  $region12: #{bn_conv_forward.1} parent=0 // pred_region
    _
  $region13: #{bn_conv_forward.1} parent=0 // pred_fallthru
    _
  %v14 = vld [vmem:[%s0] sm:$0xff]
  %v15 = vld [vmem:[%s0 + $0x8] sm:$0xff]
  %v16 = vld [vmem:[%s0 + $0x10] sm:$0xff]
  %v17 = vld [vmem:[%s0 + $0x18] sm:$0xff]
  %v18 = vld [vmem:[%s0 + $0x20] sm:$0xff]
  %v19 = vld [vmem:[%s0 + $0x28] sm:$0xff]
  %v20 = vld [vmem:[%s0 + $0x30] sm:$0xff]
  %v21 = vld [vmem:[%s0 + $0x38] sm:$0xff]
  %v22 = vld [vmem:[%s1] sm:$0xff]
  %v23 = vld [vmem:[%s1 + $0x8] sm:$0xff]
  %v24 = vld [vmem:[%s1 + $0x10] sm:$0xff]
  %v25 = vld [vmem:[%s1 + $0x18] sm:$0xff]
  %v26 = vld [vmem:[%s1 + $0x20] sm:$0xff]
  %v27 = vld [vmem:[%s1 + $0x28] sm:$0xff]
  %v28 = vld [vmem:[%s1 + $0x30] sm:$0xff]
  %v29 = vld [vmem:[%s1 + $0x38] sm:$0xff]
  %v30 = vadd.f32 %v14, %v18
  %v31 = vadd.f32 %v15, %v19
  %v32 = vadd.f32 %v16, %v20
  %v33 = vadd.f32 %v17, %v21
  %v34 = vadd.f32 %v30, %v31
  %35 = vadd.xlane.f32.xlu0 %v34
  %v36 = vpop.xlane.xlu0 %35
  %v37 = vadd.f32 %v32, %v33
  %38 = vadd.xlane.f32.xlu0 %v37
  %v39 = vpop.xlane.xlu0 %38
  %v40 = vmul.f32 %v14, %v14
  %v41 = vmul.f32 %v15, %v15
  %v42 = vmul.f32 %v16, %v16
  %v43 = vmul.f32 %v17, %v17
  %v44 = vmul.f32 %v18, %v18
  %v45 = vmul.f32 %v19, %v19
  %v46 = vmul.f32 %v20, %v20
  %v47 = vmul.f32 %v21, %v21
  %v48 = vadd.f32 %v40, %v44
  %v49 = vadd.f32 %v41, %v45
  %v50 = vadd.f32 %v42, %v46
  %v51 = vadd.f32 %v43, %v47
  %v52 = vadd.f32 %v48, %v49
  %53 = vadd.xlane.f32.xlu0 %v52
  %v54 = vpop.xlane.xlu0 %53
  %v55 = vadd.f32 %v50, %v51
  %56 = vadd.xlane.f32.xlu0 %v55
  %v57 = vpop.xlane.xlu0 %56
  %v58 = vmul.f32 %v36, 0.001953125
  %v59 = vmul.f32 %v39, 0.001953125
  %v60 = vmul.f32 %v54, 0.001953125
  %v61 = vmul.f32 %v57, 0.001953125
  %v62 = vmul.f32 %v58, %v58
  %v63 = vmul.f32 %v59, %v59
  %v64 = vsub.f32 %v60, %v62
  %v65 = vsub.f32 %v61, %v63
  %v66 = vadd.f32 %v64, 1e-05
  %v67 = vadd.f32 %v65, 1e-05
  %v68 = vrsqrt.pop %v66
  %v69 = vrsqrt.pop %v67
  %v70 = vmul.f32 %v22, %v68
  %v71 = vmul.f32 %v23, %v69
  %v72 = vmul.f32 %v58, %v70
  %v73 = vmul.f32 %v59, %v71
  %v74 = vsub.f32 %v24, %v72
  %v75 = vsub.f32 %v25, %v73
  %77 = vset.pattern.permute.xlu0 0
  %78 = vperm.xlu0 %77, %v70
  %v79 = vpop.permute.xlu0 %78
  %82 = vset.pattern.permute.xlu0 0
  %83 = vperm.xlu0 %82, %v71
  %v84 = vpop.permute.xlu0 %83
  %v86 = vmul.f32 %v14, %v79
  %v87 = vmul.f32 %v15, %v79
  %v88 = vmul.f32 %v16, %v84
  %v89 = vmul.f32 %v17, %v84
  %v90 = vmul.f32 %v18, %v79
  %v91 = vmul.f32 %v19, %v79
  %v92 = vmul.f32 %v20, %v84
  %v93 = vmul.f32 %v21, %v84
  %95 = vset.pattern.permute.xlu0 0
  %96 = vperm.xlu0 %95, %v74
  %v97 = vpop.permute.xlu0 %96
  %100 = vset.pattern.permute.xlu0 0
  %101 = vperm.xlu0 %100, %v75
  %v102 = vpop.permute.xlu0 %101
  %v104 = vadd.f32 %v86, %v97
  %v105 = vadd.f32 %v87, %v97
  %v106 = vadd.f32 %v88, %v102
  %v107 = vadd.f32 %v89, %v102
  %v108 = vadd.f32 %v90, %v97
  %v109 = vadd.f32 %v91, %v97
  %v110 = vadd.f32 %v92, %v102
  %v111 = vadd.f32 %v93, %v102
  %112 = vrot.lane.b32.xlu0 %v104, 127
  %v113 = vpop.permute.xlu0 %112
  %114 = vrot.lane.b32.xlu0 %v106, 127
  %v115 = vpop.permute.xlu0 %114
  %116 = vrot.lane.b32.xlu0 %v105, 127
  %v117 = vpop.permute.xlu0 %116
  %118 = vrot.lane.b32.xlu0 %v107, 127
  %v119 = vpop.permute.xlu0 %118
  %v120 = vlaneseq
  %v121 = vand.u32 %v120, 127
  %vm122 = vcmp.lt.s32.totalorder %v121, 127
  %v123 = vsel %vm122, %v113, %v117
  %v124 = vsel %vm122, %v115, %v119
  %v125 = vsel %vm122, %v117, %v113
  %v126 = vsel %vm122, %v119, %v115
  %127 = vrot.lane.b32.xlu0 %v104, 112
  %v128 = vpop.permute.xlu0 %127
  %129 = vrot.lane.b32.xlu0 %v106, 112
  %v130 = vpop.permute.xlu0 %129
  %131 = vrot.lane.b32.xlu0 %v105, 112
  %v132 = vpop.permute.xlu0 %131
  %133 = vrot.lane.b32.xlu0 %v107, 112
  %v134 = vpop.permute.xlu0 %133
  %vm135 = vcmp.lt.s32.totalorder %v121, 112
  %v136 = vsel %vm135, %v128, %v132
  %v137 = vsel %vm135, %v130, %v134
  %v138 = vsel %vm135, %v132, %v128
  %v139 = vsel %vm135, %v134, %v130
  %140 = vrot.lane.b32.xlu0 %v104, 111
  %v141 = vpop.permute.xlu0 %140
  %142 = vrot.lane.b32.xlu0 %v106, 111
  %v143 = vpop.permute.xlu0 %142
  %144 = vrot.lane.b32.xlu0 %v105, 111
  %v145 = vpop.permute.xlu0 %144
  %146 = vrot.lane.b32.xlu0 %v107, 111
  %v147 = vpop.permute.xlu0 %146
  %vm148 = vcmp.lt.s32.totalorder %v121, 111
  %v149 = vsel %vm148, %v141, %v145
  %v150 = vsel %vm148, %v143, %v147
  %v151 = vsel %vm148, %v145, %v141
  %v152 = vsel %vm148, %v147, %v143
  %153 = vrot.lane.b32.xlu0 %v108, 127
  %v154 = vpop.permute.xlu0 %153
  %155 = vrot.lane.b32.xlu0 %v110, 127
  %v156 = vpop.permute.xlu0 %155
  %157 = vrot.lane.b32.xlu0 %v109, 127
  %v158 = vpop.permute.xlu0 %157
  %159 = vrot.lane.b32.xlu0 %v111, 127
  %v160 = vpop.permute.xlu0 %159
  %v161 = vsel %vm122, %v154, %v158
  %v162 = vsel %vm122, %v156, %v160
  %v163 = vsel %vm122, %v158, %v154
  %v164 = vsel %vm122, %v160, %v156
  %165 = vrot.lane.b32.xlu0 %v108, 112
  %v166 = vpop.permute.xlu0 %165
  %167 = vrot.lane.b32.xlu0 %v110, 112
  %v168 = vpop.permute.xlu0 %167
  %169 = vrot.lane.b32.xlu0 %v109, 112
  %v170 = vpop.permute.xlu0 %169
  %171 = vrot.lane.b32.xlu0 %v111, 112
  %v172 = vpop.permute.xlu0 %171
  %v173 = vsel %vm135, %v166, %v170
  %v174 = vsel %vm135, %v168, %v172
  %v175 = vsel %vm135, %v170, %v166
  %v176 = vsel %vm135, %v172, %v168
  %177 = vrot.lane.b32.xlu0 %v108, 111
  %v178 = vpop.permute.xlu0 %177
  %179 = vrot.lane.b32.xlu0 %v110, 111
  %v180 = vpop.permute.xlu0 %179
  %181 = vrot.lane.b32.xlu0 %v109, 111
  %v182 = vpop.permute.xlu0 %181
  %183 = vrot.lane.b32.xlu0 %v111, 111
  %v184 = vpop.permute.xlu0 %183
  %v185 = vsel %vm148, %v178, %v182
  %v186 = vsel %vm148, %v180, %v184
  %v187 = vsel %vm148, %v182, %v178
  %v188 = vsel %vm148, %v184, %v180
  %v189 = vld [vmem:[%s2] sm:$0xff]
  %v190 = vld [vmem:[%s2 + $0x8] sm:$0xff]
  %v191 = vld [vmem:[%s2 + $0x10] sm:$0xff]
  %v192 = vld [vmem:[%s2 + $0x18] sm:$0xff]
  %194 = vset.pattern.permute.xlu0 0
  %195 = vperm.xlu0 %194, %v26
  %v196 = vpop.permute.xlu0 %195
  %199 = vset.pattern.permute.xlu0 0
  %200 = vperm.xlu0 %199, %v27
  %v201 = vpop.permute.xlu0 %200
  %204 = vset.pattern.permute.xlu0 0
  %205 = vperm.xlu0 %204, %v28
  %v206 = vpop.permute.xlu0 %205
  %209 = vset.pattern.permute.xlu0 0
  %210 = vperm.xlu0 %209, %v29
  %v211 = vpop.permute.xlu0 %210
  %vm213 = vcmask 523264
  %v215 = vsel %vm213, %v189, 0
  %v218 = vsel %vm213, %v190, 0
  %v221 = vsel %vm213, %v191, 0
  %v224 = vsel %vm213, %v192, 0
  %v226 = vand.u32 %v105, 4294901760
  %227 = vmatprep.subr.mxu0 %v226
  %v228 = vand.u32 %v104, 4294901760
  %229 = vmatpush1.msra.mxu0 %v228
  %v230 = vand.u32 %v107, 4294901760
  %231 = vmatprep.subr.mxu0 %v230
  %v232 = vand.u32 %v106, 4294901760
  %233 = vmatpush1.msra.mxu0 %v232
  %v234 = vand.u32 %v125, 4294901760
  %235 = vmatprep.subr.mxu0 %v234
  %v236 = vand.u32 %v123, 4294901760
  %237 = vmatpush1.msra.mxu0 %v236
  %v238 = vand.u32 %v126, 4294901760
  %239 = vmatprep.subr.mxu0 %v238
  %v240 = vand.u32 %v124, 4294901760
  %241 = vmatpush1.msra.mxu0 %v240
  %v242 = vand.u32 %v138, 4294901760
  %243 = vmatprep.subr.mxu0 %v242
  %v244 = vand.u32 %v136, 4294901760
  %245 = vmatpush1.msra.mxu0 %v244
  %v246 = vand.u32 %v139, 4294901760
  %247 = vmatprep.subr.mxu0 %v246
  %v248 = vand.u32 %v137, 4294901760
  %249 = vmatpush1.msra.mxu0 %v248
  %v250 = vand.u32 %v151, 4294901760
  %251 = vmatprep.subr.mxu0 %v250
  %v252 = vand.u32 %v149, 4294901760
  %253 = vmatpush1.msra.mxu0 %v252
  %v254 = vand.u32 %v152, 4294901760
  %255 = vmatprep.subr.mxu0 %v254
  %v256 = vand.u32 %v150, 4294901760
  %257 = vmatpush1.msra.mxu0 %v256
  %258 = vmatprep.subr.mxu0 0.0
  %259 = vmatpush1.msra.mxu0 0.0
  %260 = vmatprep.subr.mxu0 0.0
  %261 = vmatpush1.msra.mxu0 0.0
  %262 = vmatprep.subr.mxu0 0.0
  %263 = vmatpush1.msra.mxu0 0.0
  %264 = vmatprep.subr.mxu0 0.0
  %265 = vmatpush1.msra.mxu0 0.0
  %266 = vmatprep.subr.mxu0 0.0
  %267 = vmatpush1.msra.mxu0 0.0
  %268 = vmatprep.subr.mxu0 0.0
  %269 = vmatpush1.msra.mxu0 0.0
  %270 = vmatprep.subr.mxu0 0.0
  %271 = vmatpush1.msra.mxu0 0.0
  %272 = vmatprep.subr.mxu0 0.0
  %273 = vmatpush1.msra.mxu0 0.0
  %274 = vmatprep.subr.mxu0 0.0
  %275 = vmatpush1.msra.mxu0 0.0
  %276 = vmatprep.subr.mxu0 0.0
  %277 = vmatpush1.msra.mxu0 0.0
  %278 = vmatprep.subr.mxu0 0.0
  %279 = vmatpush1.msra.mxu0 0.0
  %280 = vmatprep.subr.mxu0 0.0
  %281 = vmatpush1.msra.mxu0 0.0
  %282 = vmatprep.subr.mxu0 0.0
  %283 = vmatpush1.msra.mxu0 0.0
  %284 = vmatprep.subr.mxu0 0.0
  %285 = vmatpush1.msra.mxu0 0.0
  %286 = vmatprep.subr.mxu0 0.0
  %287 = vmatpush1.msra.mxu0 0.0
  %288 = vmatprep.subr.mxu0 0.0
  %289 = vmatpush1.msra.mxu0 0.0
  %290 = vmatprep.subr.mxu0 0.0
  %291 = vmatpush1.msra.mxu0 0.0
  %292 = vmatprep.subr.mxu0 0.0
  %293 = vmatpush1.msra.mxu0 0.0
  %294 = vmatprep.subr.mxu0 0.0
  %295 = vmatpush1.msra.mxu0 0.0
  %296 = vmatprep.subr.mxu0 0.0
  %297 = vmatpush1.msra.mxu0 0.0
  %298 = vmatprep.subr.mxu0 0.0
  %299 = vmatpush1.msra.mxu0 0.0
  %300 = vmatprep.subr.mxu0 0.0
  %301 = vmatpush1.msra.mxu0 0.0
  %302 = vmatprep.subr.mxu0 0.0
  %303 = vmatpush1.msra.mxu0 0.0
  %304 = vmatprep.subr.mxu0 0.0
  %305 = vmatpush1.msra.mxu0 0.0
  %306 = vmatprep.mubr.f32.mxu0 0.0
  %v307 = vand.u32 %v215, 4294901760
  %v308 = vsub.f32 %v215, %v307
  %v309 = vand.u32 %v308, 4294901760
  %v310 = vsub.f32 %v308, %v309
  %v311 = vand.u32 %v310, 4294901760
  %312 = vmatmul.mubr.f32.gmra.mrb[0].mxu0 %v311
  %v313 = vpop.f32.mrb[0].mxu0
  %v314 = vadd.f32 %v196, %v313
  %v315 = vpop.f32.mrb[0].mxu0
  %v316 = vadd.f32 %v196, %v315
  %317 = vmatprep.mubr.f32.mxu0 0.0
  %v318 = vand.u32 %v218, 4294901760
  %v319 = vsub.f32 %v218, %v318
  %v320 = vand.u32 %v319, 4294901760
  %v321 = vsub.f32 %v319, %v320
  %v322 = vand.u32 %v321, 4294901760
  %323 = vmatmul.mubr.f32.gmra.mrb[0].mxu0 %v322
  %v324 = vpop.f32.mrb[0].mxu0
  %v325 = vadd.f32 %v201, %v324
  %v326 = vpop.f32.mrb[0].mxu0
  %v327 = vadd.f32 %v201, %v326
  %328 = vmatprep.mubr.f32.mxu0 0.0
  %v329 = vand.u32 %v221, 4294901760
  %v330 = vsub.f32 %v221, %v329
  %v331 = vand.u32 %v330, 4294901760
  %v332 = vsub.f32 %v330, %v331
  %v333 = vand.u32 %v332, 4294901760
  %334 = vmatmul.mubr.f32.gmra.mrb[0].mxu0 %v333
  %v335 = vpop.f32.mrb[0].mxu0
  %v336 = vadd.f32 %v206, %v335
  %v337 = vpop.f32.mrb[0].mxu0
  %v338 = vadd.f32 %v206, %v337
  %339 = vmatprep.mubr.f32.mxu0 0.0
  %v340 = vand.u32 %v224, 4294901760
  %v341 = vsub.f32 %v224, %v340
  %v342 = vand.u32 %v341, 4294901760
  %v343 = vsub.f32 %v341, %v342
  %v344 = vand.u32 %v343, 4294901760
  %345 = vmatmul.mubr.f32.gmra.mrb[0].mxu0 %v344
  %v346 = vpop.f32.mrb[0].mxu0
  %v347 = vadd.f32 %v211, %v346
  %v348 = vpop.f32.mrb[0].mxu0
  %v349 = vadd.f32 %v211, %v348
  %350 = vdwg.mxu0
  %v351 = vand.u32 %v105, 4294901760
  %v352 = vsub.f32 %v105, %v351
  %v353 = vand.u32 %v352, 4294901760
  %v354 = vsub.f32 %v352, %v353
  %v355 = vand.u32 %v354, 4294901760
  %356 = vmatprep.subr.mxu0 %v355
  %v357 = vand.u32 %v104, 4294901760
  %v358 = vsub.f32 %v104, %v357
  %v359 = vand.u32 %v358, 4294901760
  %v360 = vsub.f32 %v358, %v359
  %v361 = vand.u32 %v360, 4294901760
  %362 = vmatpush1.msra.mxu0 %v361
  %v363 = vand.u32 %v107, 4294901760
  %v364 = vsub.f32 %v107, %v363
  %v365 = vand.u32 %v364, 4294901760
  %v366 = vsub.f32 %v364, %v365
  %v367 = vand.u32 %v366, 4294901760
  %368 = vmatprep.subr.mxu0 %v367
  %v369 = vand.u32 %v106, 4294901760
  %v370 = vsub.f32 %v106, %v369
  %v371 = vand.u32 %v370, 4294901760
  %v372 = vsub.f32 %v370, %v371
  %v373 = vand.u32 %v372, 4294901760
  %374 = vmatpush1.msra.mxu0 %v373
  %v375 = vand.u32 %v125, 4294901760
  %v376 = vsub.f32 %v125, %v375
  %v377 = vand.u32 %v376, 4294901760
  %v378 = vsub.f32 %v376, %v377
  %v379 = vand.u32 %v378, 4294901760
  %380 = vmatprep.subr.mxu0 %v379
  %v381 = vand.u32 %v123, 4294901760
  %v382 = vsub.f32 %v123, %v381
  %v383 = vand.u32 %v382, 4294901760
  %v384 = vsub.f32 %v382, %v383
  %v385 = vand.u32 %v384, 4294901760
  %386 = vmatpush1.msra.mxu0 %v385
  %v387 = vand.u32 %v126, 4294901760
  %v388 = vsub.f32 %v126, %v387
  %v389 = vand.u32 %v388, 4294901760
  %v390 = vsub.f32 %v388, %v389
  %v391 = vand.u32 %v390, 4294901760
  %392 = vmatprep.subr.mxu0 %v391
  %v393 = vand.u32 %v124, 4294901760
  %v394 = vsub.f32 %v124, %v393
  %v395 = vand.u32 %v394, 4294901760
  %v396 = vsub.f32 %v394, %v395
  %v397 = vand.u32 %v396, 4294901760
  %398 = vmatpush1.msra.mxu0 %v397
  %v399 = vand.u32 %v138, 4294901760
  %v400 = vsub.f32 %v138, %v399
  %v401 = vand.u32 %v400, 4294901760
  %v402 = vsub.f32 %v400, %v401
  %v403 = vand.u32 %v402, 4294901760
  %404 = vmatprep.subr.mxu0 %v403
  %v405 = vand.u32 %v136, 4294901760
  %v406 = vsub.f32 %v136, %v405
  %v407 = vand.u32 %v406, 4294901760
  %v408 = vsub.f32 %v406, %v407
  %v409 = vand.u32 %v408, 4294901760
  %410 = vmatpush1.msra.mxu0 %v409
  %v411 = vand.u32 %v139, 4294901760
  %v412 = vsub.f32 %v139, %v411
  %v413 = vand.u32 %v412, 4294901760
  %v414 = vsub.f32 %v412, %v413
  %v415 = vand.u32 %v414, 4294901760
  %416 = vmatprep.subr.mxu0 %v415
  %v417 = vand.u32 %v137, 4294901760
  %v418 = vsub.f32 %v137, %v417
  %v419 = vand.u32 %v418, 4294901760
  %v420 = vsub.f32 %v418, %v419
  %v421 = vand.u32 %v420, 4294901760
  %422 = vmatpush1.msra.mxu0 %v421
  %v423 = vand.u32 %v151, 4294901760
  %v424 = vsub.f32 %v151, %v423
  %v425 = vand.u32 %v424, 4294901760
  %v426 = vsub.f32 %v424, %v425
  %v427 = vand.u32 %v426, 4294901760
  %428 = vmatprep.subr.mxu0 %v427
  %v429 = vand.u32 %v149, 4294901760
  %v430 = vsub.f32 %v149, %v429
  %v431 = vand.u32 %v430, 4294901760
  %v432 = vsub.f32 %v430, %v431
  %v433 = vand.u32 %v432, 4294901760
  %434 = vmatpush1.msra.mxu0 %v433
  %v435 = vand.u32 %v152, 4294901760
  %v436 = vsub.f32 %v152, %v435
  %v437 = vand.u32 %v436, 4294901760
  %v438 = vsub.f32 %v436, %v437
  %v439 = vand.u32 %v438, 4294901760
  %440 = vmatprep.subr.mxu0 %v439
  %v441 = vand.u32 %v150, 4294901760
  %v442 = vsub.f32 %v150, %v441
  %v443 = vand.u32 %v442, 4294901760
  %v444 = vsub.f32 %v442, %v443
  %v445 = vand.u32 %v444, 4294901760
  %446 = vmatpush1.msra.mxu0 %v445
  %447 = vmatprep.subr.mxu0 0.0
  %448 = vmatpush1.msra.mxu0 0.0
  %449 = vmatprep.subr.mxu0 0.0
  %450 = vmatpush1.msra.mxu0 0.0
  %451 = vmatprep.subr.mxu0 0.0
  %452 = vmatpush1.msra.mxu0 0.0
  %453 = vmatprep.subr.mxu0 0.0
  %454 = vmatpush1.msra.mxu0 0.0
  %455 = vmatprep.subr.mxu0 0.0
  %456 = vmatpush1.msra.mxu0 0.0
  %457 = vmatprep.subr.mxu0 0.0
  %458 = vmatpush1.msra.mxu0 0.0
  %459 = vmatprep.subr.mxu0 0.0
  %460 = vmatpush1.msra.mxu0 0.0
  %461 = vmatprep.subr.mxu0 0.0
  %462 = vmatpush1.msra.mxu0 0.0
  %463 = vmatprep.subr.mxu0 0.0
  %464 = vmatpush1.msra.mxu0 0.0
  %465 = vmatprep.subr.mxu0 0.0
  %466 = vmatpush1.msra.mxu0 0.0
  %467 = vmatprep.subr.mxu0 0.0
  %468 = vmatpush1.msra.mxu0 0.0
  %469 = vmatprep.subr.mxu0 0.0
  %470 = vmatpush1.msra.mxu0 0.0
  %471 = vmatprep.subr.mxu0 0.0
  %472 = vmatpush1.msra.mxu0 0.0
  %473 = vmatprep.subr.mxu0 0.0
  %474 = vmatpush1.msra.mxu0 0.0
  %475 = vmatprep.subr.mxu0 0.0
  %476 = vmatpush1.msra.mxu0 0.0
  %477 = vmatprep.subr.mxu0 0.0
  %478 = vmatpush1.msra.mxu0 0.0
  %479 = vmatprep.subr.mxu0 0.0
  %480 = vmatpush1.msra.mxu0 0.0
  %481 = vmatprep.subr.mxu0 0.0
  %482 = vmatpush1.msra.mxu0 0.0
  %483 = vmatprep.subr.mxu0 0.0
  %484 = vmatpush1.msra.mxu0 0.0
  %485 = vmatprep.subr.mxu0 0.0
  %486 = vmatpush1.msra.mxu0 0.0
  %487 = vmatprep.subr.mxu0 0.0
  %488 = vmatpush1.msra.mxu0 0.0
  %489 = vmatprep.subr.mxu0 0.0
  %490 = vmatpush1.msra.mxu0 0.0
  %491 = vmatprep.subr.mxu0 0.0
  %492 = vmatpush1.msra.mxu0 0.0
  %493 = vmatprep.subr.mxu0 0.0
  %494 = vmatpush1.msra.mxu0 0.0
  %495 = vmatprep.mubr.f32.mxu0 0.0
  %v496 = vand.u32 %v215, 4294901760
  %497 = vmatmul.mubr.f32.gmra.mrb[0].mxu0 %v496
  %v498 = vpop.f32.mrb[0].mxu0
  %v499 = vadd.f32 %v314, %v498
  %v500 = vpop.f32.mrb[0].mxu0
  %v501 = vadd.f32 %v316, %v500
  %502 = vmatprep.mubr.f32.mxu0 0.0
  %v503 = vand.u32 %v218, 4294901760
  %504 = vmatmul.mubr.f32.gmra.mrb[0].mxu0 %v503
  %v505 = vpop.f32.mrb[0].mxu0
  %v506 = vadd.f32 %v325, %v505
  %v507 = vpop.f32.mrb[0].mxu0
  %v508 = vadd.f32 %v327, %v507
  %509 = vmatprep.mubr.f32.mxu0 0.0
  %v510 = vand.u32 %v221, 4294901760
  %511 = vmatmul.mubr.f32.gmra.mrb[0].mxu0 %v510
  %v512 = vpop.f32.mrb[0].mxu0
  %v513 = vadd.f32 %v336, %v512
  %v514 = vpop.f32.mrb[0].mxu0
  %v515 = vadd.f32 %v338, %v514
  %516 = vmatprep.mubr.f32.mxu0 0.0
  %v517 = vand.u32 %v224, 4294901760
  %518 = vmatmul.mubr.f32.gmra.mrb[0].mxu0 %v517
  %v519 = vpop.f32.mrb[0].mxu0
  %v520 = vadd.f32 %v347, %v519
  %v521 = vpop.f32.mrb[0].mxu0
  %v522 = vadd.f32 %v349, %v521
  %523 = vdwg.mxu0
  %v524 = vand.u32 %v105, 4294901760
  %v525 = vsub.f32 %v105, %v524
  %526 = vmatprep.subr.mxu0 %v525
  %v527 = vand.u32 %v104, 4294901760
  %v528 = vsub.f32 %v104, %v527
  %529 = vmatpush1.msra.mxu0 %v528
  %v530 = vand.u32 %v107, 4294901760
  %v531 = vsub.f32 %v107, %v530
  %532 = vmatprep.subr.mxu0 %v531
  %v533 = vand.u32 %v106, 4294901760
  %v534 = vsub.f32 %v106, %v533
  %535 = vmatpush1.msra.mxu0 %v534
  %v536 = vand.u32 %v125, 4294901760
  %v537 = vsub.f32 %v125, %v536
  %538 = vmatprep.subr.mxu0 %v537
  %v539 = vand.u32 %v123, 4294901760
  %v540 = vsub.f32 %v123, %v539
  %541 = vmatpush1.msra.mxu0 %v540
  %v542 = vand.u32 %v126, 4294901760
  %v543 = vsub.f32 %v126, %v542
  %544 = vmatprep.subr.mxu0 %v543
  %v545 = vand.u32 %v124, 4294901760
  %v546 = vsub.f32 %v124, %v545
  %547 = vmatpush1.msra.mxu0 %v546
  %v548 = vand.u32 %v138, 4294901760
  %v549 = vsub.f32 %v138, %v548
  %550 = vmatprep.subr.mxu0 %v549
  %v551 = vand.u32 %v136, 4294901760
  %v552 = vsub.f32 %v136, %v551
  %553 = vmatpush1.msra.mxu0 %v552
  %v554 = vand.u32 %v139, 4294901760
  %v555 = vsub.f32 %v139, %v554
  %556 = vmatprep.subr.mxu0 %v555
  %v557 = vand.u32 %v137, 4294901760
  %v558 = vsub.f32 %v137, %v557
  %559 = vmatpush1.msra.mxu0 %v558
  %v560 = vand.u32 %v151, 4294901760
  %v561 = vsub.f32 %v151, %v560
  %562 = vmatprep.subr.mxu0 %v561
  %v563 = vand.u32 %v149, 4294901760
  %v564 = vsub.f32 %v149, %v563
  %565 = vmatpush1.msra.mxu0 %v564
  %v566 = vand.u32 %v152, 4294901760
  %v567 = vsub.f32 %v152, %v566
  %568 = vmatprep.subr.mxu0 %v567
  %v569 = vand.u32 %v150, 4294901760
  %v570 = vsub.f32 %v150, %v569
  %571 = vmatpush1.msra.mxu0 %v570
  %572 = vmatprep.subr.mxu0 0.0
  %573 = vmatpush1.msra.mxu0 0.0
  %574 = vmatprep.subr.mxu0 0.0
  %575 = vmatpush1.msra.mxu0 0.0
  %576 = vmatprep.subr.mxu0 0.0
  %577 = vmatpush1.msra.mxu0 0.0
  %578 = vmatprep.subr.mxu0 0.0
  %579 = vmatpush1.msra.mxu0 0.0
  %580 = vmatprep.subr.mxu0 0.0
  %581 = vmatpush1.msra.mxu0 0.0
  %582 = vmatprep.subr.mxu0 0.0
  %583 = vmatpush1.msra.mxu0 0.0
  %584 = vmatprep.subr.mxu0 0.0
  %585 = vmatpush1.msra.mxu0 0.0
  %586 = vmatprep.subr.mxu0 0.0
  %587 = vmatpush1.msra.mxu0 0.0
  %588 = vmatprep.subr.mxu0 0.0
  %589 = vmatpush1.msra.mxu0 0.0
  %590 = vmatprep.subr.mxu0 0.0
  %591 = vmatpush1.msra.mxu0 0.0
  %592 = vmatprep.subr.mxu0 0.0
  %593 = vmatpush1.msra.mxu0 0.0
  %594 = vmatprep.subr.mxu0 0.0
  %595 = vmatpush1.msra.mxu0 0.0
  %596 = vmatprep.subr.mxu0 0.0
  %597 = vmatpush1.msra.mxu0 0.0
  %598 = vmatprep.subr.mxu0 0.0
  %599 = vmatpush1.msra.mxu0 0.0
  %600 = vmatprep.subr.mxu0 0.0
  %601 = vmatpush1.msra.mxu0 0.0
  %602 = vmatprep.subr.mxu0 0.0
  %603 = vmatpush1.msra.mxu0 0.0
  %604 = vmatprep.subr.mxu0 0.0
  %605 = vmatpush1.msra.mxu0 0.0
  %606 = vmatprep.subr.mxu0 0.0
  %607 = vmatpush1.msra.mxu0 0.0
  %608 = vmatprep.subr.mxu0 0.0
  %609 = vmatpush1.msra.mxu0 0.0
  %610 = vmatprep.subr.mxu0 0.0
  %611 = vmatpush1.msra.mxu0 0.0
  %612 = vmatprep.subr.mxu0 0.0
  %613 = vmatpush1.msra.mxu0 0.0
  %614 = vmatprep.subr.mxu0 0.0
  %615 = vmatpush1.msra.mxu0 0.0
  %616 = vmatprep.subr.mxu0 0.0
  %617 = vmatpush1.msra.mxu0 0.0
  %618 = vmatprep.subr.mxu0 0.0
  %619 = vmatpush1.msra.mxu0 0.0
  %620 = vmatprep.mubr.f32.mxu0 0.0
  %v621 = vand.u32 %v215, 4294901760
  %v622 = vsub.f32 %v215, %v621
  %623 = vmatmul.mubr.f32.gmra.mrb[0].mxu0 %v622
  %v624 = vpop.f32.mrb[0].mxu0
  %v625 = vadd.f32 %v499, %v624
  %v626 = vpop.f32.mrb[0].mxu0
  %v627 = vadd.f32 %v501, %v626
  %628 = vmatprep.mubr.f32.mxu0 0.0
  %v629 = vand.u32 %v218, 4294901760
  %v630 = vsub.f32 %v218, %v629
  %631 = vmatmul.mubr.f32.gmra.mrb[0].mxu0 %v630
  %v632 = vpop.f32.mrb[0].mxu0
  %v633 = vadd.f32 %v506, %v632
  %v634 = vpop.f32.mrb[0].mxu0
  %v635 = vadd.f32 %v508, %v634
  %636 = vmatprep.mubr.f32.mxu0 0.0
  %v637 = vand.u32 %v221, 4294901760
  %v638 = vsub.f32 %v221, %v637
  %639 = vmatmul.mubr.f32.gmra.mrb[0].mxu0 %v638
  %v640 = vpop.f32.mrb[0].mxu0
  %v641 = vadd.f32 %v513, %v640
  %v642 = vpop.f32.mrb[0].mxu0
  %v643 = vadd.f32 %v515, %v642
  %644 = vmatprep.mubr.f32.mxu0 0.0
  %v645 = vand.u32 %v224, 4294901760
  %v646 = vsub.f32 %v224, %v645
  %647 = vmatmul.mubr.f32.gmra.mrb[0].mxu0 %v646
  %v648 = vpop.f32.mrb[0].mxu0
  %v649 = vadd.f32 %v520, %v648
  %v650 = vpop.f32.mrb[0].mxu0
  %v651 = vadd.f32 %v522, %v650
  %652 = vdwg.mxu0
  %v653 = vand.u32 %v105, 4294901760
  %654 = vmatprep.subr.mxu0 %v653
  %v655 = vand.u32 %v104, 4294901760
  %656 = vmatpush1.msra.mxu0 %v655
  %v657 = vand.u32 %v107, 4294901760
  %658 = vmatprep.subr.mxu0 %v657
  %v659 = vand.u32 %v106, 4294901760
  %660 = vmatpush1.msra.mxu0 %v659
  %v661 = vand.u32 %v125, 4294901760
  %662 = vmatprep.subr.mxu0 %v661
  %v663 = vand.u32 %v123, 4294901760
  %664 = vmatpush1.msra.mxu0 %v663
  %v665 = vand.u32 %v126, 4294901760
  %666 = vmatprep.subr.mxu0 %v665
  %v667 = vand.u32 %v124, 4294901760
  %668 = vmatpush1.msra.mxu0 %v667
  %v669 = vand.u32 %v138, 4294901760
  %670 = vmatprep.subr.mxu0 %v669
  %v671 = vand.u32 %v136, 4294901760
  %672 = vmatpush1.msra.mxu0 %v671
  %v673 = vand.u32 %v139, 4294901760
  %674 = vmatprep.subr.mxu0 %v673
  %v675 = vand.u32 %v137, 4294901760
  %676 = vmatpush1.msra.mxu0 %v675
  %v677 = vand.u32 %v151, 4294901760
  %678 = vmatprep.subr.mxu0 %v677
  %v679 = vand.u32 %v149, 4294901760
  %680 = vmatpush1.msra.mxu0 %v679
  %v681 = vand.u32 %v152, 4294901760
  %682 = vmatprep.subr.mxu0 %v681
  %v683 = vand.u32 %v150, 4294901760
  %684 = vmatpush1.msra.mxu0 %v683
  %685 = vmatprep.subr.mxu0 0.0
  %686 = vmatpush1.msra.mxu0 0.0
  %687 = vmatprep.subr.mxu0 0.0
  %688 = vmatpush1.msra.mxu0 0.0
  %689 = vmatprep.subr.mxu0 0.0
  %690 = vmatpush1.msra.mxu0 0.0
  %691 = vmatprep.subr.mxu0 0.0
  %692 = vmatpush1.msra.mxu0 0.0
  %693 = vmatprep.subr.mxu0 0.0
  %694 = vmatpush1.msra.mxu0 0.0
  %695 = vmatprep.subr.mxu0 0.0
  %696 = vmatpush1.msra.mxu0 0.0
  %697 = vmatprep.subr.mxu0 0.0
  %698 = vmatpush1.msra.mxu0 0.0
  %699 = vmatprep.subr.mxu0 0.0
  %700 = vmatpush1.msra.mxu0 0.0
  %701 = vmatprep.subr.mxu0 0.0
  %702 = vmatpush1.msra.mxu0 0.0
  %703 = vmatprep.subr.mxu0 0.0
  %704 = vmatpush1.msra.mxu0 0.0
  %705 = vmatprep.subr.mxu0 0.0
  %706 = vmatpush1.msra.mxu0 0.0
  %707 = vmatprep.subr.mxu0 0.0
  %708 = vmatpush1.msra.mxu0 0.0
  %709 = vmatprep.subr.mxu0 0.0
  %710 = vmatpush1.msra.mxu0 0.0
  %711 = vmatprep.subr.mxu0 0.0
  %712 = vmatpush1.msra.mxu0 0.0
  %713 = vmatprep.subr.mxu0 0.0
  %714 = vmatpush1.msra.mxu0 0.0
  %715 = vmatprep.subr.mxu0 0.0
  %716 = vmatpush1.msra.mxu0 0.0
  %717 = vmatprep.subr.mxu0 0.0
  %718 = vmatpush1.msra.mxu0 0.0
  %719 = vmatprep.subr.mxu0 0.0
  %720 = vmatpush1.msra.mxu0 0.0
  %721 = vmatprep.subr.mxu0 0.0
  %722 = vmatpush1.msra.mxu0 0.0
  %723 = vmatprep.subr.mxu0 0.0
  %724 = vmatpush1.msra.mxu0 0.0
  %725 = vmatprep.subr.mxu0 0.0
  %726 = vmatpush1.msra.mxu0 0.0
  %727 = vmatprep.subr.mxu0 0.0
  %728 = vmatpush1.msra.mxu0 0.0
  %729 = vmatprep.subr.mxu0 0.0
  %730 = vmatpush1.msra.mxu0 0.0
  %731 = vmatprep.subr.mxu0 0.0
  %732 = vmatpush1.msra.mxu0 0.0
  %733 = vmatprep.mubr.f32.mxu0 0.0
  %v734 = vand.u32 %v215, 4294901760
  %v735 = vsub.f32 %v215, %v734
  %v736 = vand.u32 %v735, 4294901760
  %737 = vmatmul.mubr.f32.gmra.mrb[0].mxu0 %v736
  %v738 = vpop.f32.mrb[0].mxu0
  %v739 = vadd.f32 %v625, %v738
  %v740 = vpop.f32.mrb[0].mxu0
  %v741 = vadd.f32 %v627, %v740
  %742 = vmatprep.mubr.f32.mxu0 0.0
  %v743 = vand.u32 %v218, 4294901760
  %v744 = vsub.f32 %v218, %v743
  %v745 = vand.u32 %v744, 4294901760
  %746 = vmatmul.mubr.f32.gmra.mrb[0].mxu0 %v745
  %v747 = vpop.f32.mrb[0].mxu0
  %v748 = vadd.f32 %v633, %v747
  %v749 = vpop.f32.mrb[0].mxu0
  %v750 = vadd.f32 %v635, %v749
  %751 = vmatprep.mubr.f32.mxu0 0.0
  %v752 = vand.u32 %v221, 4294901760
  %v753 = vsub.f32 %v221, %v752
  %v754 = vand.u32 %v753, 4294901760
  %755 = vmatmul.mubr.f32.gmra.mrb[0].mxu0 %v754
  %v756 = vpop.f32.mrb[0].mxu0
  %v757 = vadd.f32 %v641, %v756
  %v758 = vpop.f32.mrb[0].mxu0
  %v759 = vadd.f32 %v643, %v758
  %760 = vmatprep.mubr.f32.mxu0 0.0
  %v761 = vand.u32 %v224, 4294901760
  %v762 = vsub.f32 %v224, %v761
  %v763 = vand.u32 %v762, 4294901760
  %764 = vmatmul.mubr.f32.gmra.mrb[0].mxu0 %v763
  %v765 = vpop.f32.mrb[0].mxu0
  %v766 = vadd.f32 %v649, %v765
  %v767 = vpop.f32.mrb[0].mxu0
  %v768 = vadd.f32 %v651, %v767
  %769 = vdwg.mxu0
  %v770 = vand.u32 %v105, 4294901760
  %v771 = vsub.f32 %v105, %v770
  %v772 = vand.u32 %v771, 4294901760
  %773 = vmatprep.subr.mxu0 %v772
  %v774 = vand.u32 %v104, 4294901760
  %v775 = vsub.f32 %v104, %v774
  %v776 = vand.u32 %v775, 4294901760
  %777 = vmatpush1.msra.mxu0 %v776
  %v778 = vand.u32 %v107, 4294901760
  %v779 = vsub.f32 %v107, %v778
  %v780 = vand.u32 %v779, 4294901760
  %781 = vmatprep.subr.mxu0 %v780
  %v782 = vand.u32 %v106, 4294901760
  %v783 = vsub.f32 %v106, %v782
  %v784 = vand.u32 %v783, 4294901760
  %785 = vmatpush1.msra.mxu0 %v784
  %v786 = vand.u32 %v125, 4294901760
  %v787 = vsub.f32 %v125, %v786
  %v788 = vand.u32 %v787, 4294901760
  %789 = vmatprep.subr.mxu0 %v788
  %v790 = vand.u32 %v123, 4294901760
  %v791 = vsub.f32 %v123, %v790
  %v792 = vand.u32 %v791, 4294901760
  %793 = vmatpush1.msra.mxu0 %v792
  %v794 = vand.u32 %v126, 4294901760
  %v795 = vsub.f32 %v126, %v794
  %v796 = vand.u32 %v795, 4294901760
  %797 = vmatprep.subr.mxu0 %v796
  %v798 = vand.u32 %v124, 4294901760
  %v799 = vsub.f32 %v124, %v798
  %v800 = vand.u32 %v799, 4294901760
  %801 = vmatpush1.msra.mxu0 %v800
  %v802 = vand.u32 %v138, 4294901760
  %v803 = vsub.f32 %v138, %v802
  %v804 = vand.u32 %v803, 4294901760
  %805 = vmatprep.subr.mxu0 %v804
  %v806 = vand.u32 %v136, 4294901760
  %v807 = vsub.f32 %v136, %v806
  %v808 = vand.u32 %v807, 4294901760
  %809 = vmatpush1.msra.mxu0 %v808
  %v810 = vand.u32 %v139, 4294901760
  %v811 = vsub.f32 %v139, %v810
  %v812 = vand.u32 %v811, 4294901760
  %813 = vmatprep.subr.mxu0 %v812
  %v814 = vand.u32 %v137, 4294901760
  %v815 = vsub.f32 %v137, %v814
  %v816 = vand.u32 %v815, 4294901760
  %817 = vmatpush1.msra.mxu0 %v816
  %v818 = vand.u32 %v151, 4294901760
  %v819 = vsub.f32 %v151, %v818
  %v820 = vand.u32 %v819, 4294901760
  %821 = vmatprep.subr.mxu0 %v820
  %v822 = vand.u32 %v149, 4294901760
  %v823 = vsub.f32 %v149, %v822
  %v824 = vand.u32 %v823, 4294901760
  %825 = vmatpush1.msra.mxu0 %v824
  %v826 = vand.u32 %v152, 4294901760
  %v827 = vsub.f32 %v152, %v826
  %v828 = vand.u32 %v827, 4294901760
  %829 = vmatprep.subr.mxu0 %v828
  %v830 = vand.u32 %v150, 4294901760
  %v831 = vsub.f32 %v150, %v830
  %v832 = vand.u32 %v831, 4294901760
  %833 = vmatpush1.msra.mxu0 %v832
  %834 = vmatprep.subr.mxu0 0.0
  %835 = vmatpush1.msra.mxu0 0.0
  %836 = vmatprep.subr.mxu0 0.0
  %837 = vmatpush1.msra.mxu0 0.0
  %838 = vmatprep.subr.mxu0 0.0
  %839 = vmatpush1.msra.mxu0 0.0
  %840 = vmatprep.subr.mxu0 0.0
  %841 = vmatpush1.msra.mxu0 0.0
  %842 = vmatprep.subr.mxu0 0.0
  %843 = vmatpush1.msra.mxu0 0.0
  %844 = vmatprep.subr.mxu0 0.0
  %845 = vmatpush1.msra.mxu0 0.0
  %846 = vmatprep.subr.mxu0 0.0
  %847 = vmatpush1.msra.mxu0 0.0
  %848 = vmatprep.subr.mxu0 0.0
  %849 = vmatpush1.msra.mxu0 0.0
  %850 = vmatprep.subr.mxu0 0.0
  %851 = vmatpush1.msra.mxu0 0.0
  %852 = vmatprep.subr.mxu0 0.0
  %853 = vmatpush1.msra.mxu0 0.0
  %854 = vmatprep.subr.mxu0 0.0
  %855 = vmatpush1.msra.mxu0 0.0
  %856 = vmatprep.subr.mxu0 0.0
  %857 = vmatpush1.msra.mxu0 0.0
  %858 = vmatprep.subr.mxu0 0.0
  %859 = vmatpush1.msra.mxu0 0.0
  %860 = vmatprep.subr.mxu0 0.0
  %861 = vmatpush1.msra.mxu0 0.0
  %862 = vmatprep.subr.mxu0 0.0
  %863 = vmatpush1.msra.mxu0 0.0
  %864 = vmatprep.subr.mxu0 0.0
  %865 = vmatpush1.msra.mxu0 0.0
  %866 = vmatprep.subr.mxu0 0.0
  %867 = vmatpush1.msra.mxu0 0.0
  %868 = vmatprep.subr.mxu0 0.0
  %869 = vmatpush1.msra.mxu0 0.0
  %870 = vmatprep.subr.mxu0 0.0
  %871 = vmatpush1.msra.mxu0 0.0
  %872 = vmatprep.subr.mxu0 0.0
  %873 = vmatpush1.msra.mxu0 0.0
  %874 = vmatprep.subr.mxu0 0.0
  %875 = vmatpush1.msra.mxu0 0.0
  %876 = vmatprep.subr.mxu0 0.0
  %877 = vmatpush1.msra.mxu0 0.0
  %878 = vmatprep.subr.mxu0 0.0
  %879 = vmatpush1.msra.mxu0 0.0
  %880 = vmatprep.subr.mxu0 0.0
  %881 = vmatpush1.msra.mxu0 0.0
  %882 = vmatprep.mubr.f32.mxu0 0.0
  %v883 = vand.u32 %v215, 4294901760
  %884 = vmatmul.mubr.f32.gmra.mrb[0].mxu0 %v883
  %v885 = vpop.f32.mrb[0].mxu0
  %v886 = vadd.f32 %v739, %v885
  %v887 = vpop.f32.mrb[0].mxu0
  %v888 = vadd.f32 %v741, %v887
  %889 = vmatprep.mubr.f32.mxu0 0.0
  %v890 = vand.u32 %v218, 4294901760
  %891 = vmatmul.mubr.f32.gmra.mrb[0].mxu0 %v890
  %v892 = vpop.f32.mrb[0].mxu0
  %v893 = vadd.f32 %v748, %v892
  %v894 = vpop.f32.mrb[0].mxu0
  %v895 = vadd.f32 %v750, %v894
  %896 = vmatprep.mubr.f32.mxu0 0.0
  %v897 = vand.u32 %v221, 4294901760
  %898 = vmatmul.mubr.f32.gmra.mrb[0].mxu0 %v897
  %v899 = vpop.f32.mrb[0].mxu0
  %v900 = vadd.f32 %v757, %v899
  %v901 = vpop.f32.mrb[0].mxu0
  %v902 = vadd.f32 %v759, %v901
  %903 = vmatprep.mubr.f32.mxu0 0.0
  %v904 = vand.u32 %v224, 4294901760
  %905 = vmatmul.mubr.f32.gmra.mrb[0].mxu0 %v904
  %v906 = vpop.f32.mrb[0].mxu0
  %v907 = vadd.f32 %v766, %v906
  %v908 = vpop.f32.mrb[0].mxu0
  %v909 = vadd.f32 %v768, %v908
  %910 = vdwg.mxu0
  %v911 = vand.u32 %v105, 4294901760
  %912 = vmatprep.subr.mxu0 %v911
  %v913 = vand.u32 %v104, 4294901760
  %914 = vmatpush1.msra.mxu0 %v913
  %v915 = vand.u32 %v107, 4294901760
  %916 = vmatprep.subr.mxu0 %v915
  %v917 = vand.u32 %v106, 4294901760
  %918 = vmatpush1.msra.mxu0 %v917
  %v919 = vand.u32 %v125, 4294901760
  %920 = vmatprep.subr.mxu0 %v919
  %v921 = vand.u32 %v123, 4294901760
  %922 = vmatpush1.msra.mxu0 %v921
  %v923 = vand.u32 %v126, 4294901760
  %924 = vmatprep.subr.mxu0 %v923
  %v925 = vand.u32 %v124, 4294901760
  %926 = vmatpush1.msra.mxu0 %v925
  %v927 = vand.u32 %v138, 4294901760
  %928 = vmatprep.subr.mxu0 %v927
  %v929 = vand.u32 %v136, 4294901760
  %930 = vmatpush1.msra.mxu0 %v929
  %v931 = vand.u32 %v139, 4294901760
  %932 = vmatprep.subr.mxu0 %v931
  %v933 = vand.u32 %v137, 4294901760
  %934 = vmatpush1.msra.mxu0 %v933
  %v935 = vand.u32 %v151, 4294901760
  %936 = vmatprep.subr.mxu0 %v935
  %v937 = vand.u32 %v149, 4294901760
  %938 = vmatpush1.msra.mxu0 %v937
  %v939 = vand.u32 %v152, 4294901760
  %940 = vmatprep.subr.mxu0 %v939
  %v941 = vand.u32 %v150, 4294901760
  %942 = vmatpush1.msra.mxu0 %v941
  %943 = vmatprep.subr.mxu0 0.0
  %944 = vmatpush1.msra.mxu0 0.0
  %945 = vmatprep.subr.mxu0 0.0
  %946 = vmatpush1.msra.mxu0 0.0
  %947 = vmatprep.subr.mxu0 0.0
  %948 = vmatpush1.msra.mxu0 0.0
  %949 = vmatprep.subr.mxu0 0.0
  %950 = vmatpush1.msra.mxu0 0.0
  %951 = vmatprep.subr.mxu0 0.0
  %952 = vmatpush1.msra.mxu0 0.0
  %953 = vmatprep.subr.mxu0 0.0
  %954 = vmatpush1.msra.mxu0 0.0
  %955 = vmatprep.subr.mxu0 0.0
  %956 = vmatpush1.msra.mxu0 0.0
  %957 = vmatprep.subr.mxu0 0.0
  %958 = vmatpush1.msra.mxu0 0.0
  %959 = vmatprep.subr.mxu0 0.0
  %960 = vmatpush1.msra.mxu0 0.0
  %961 = vmatprep.subr.mxu0 0.0
  %962 = vmatpush1.msra.mxu0 0.0
  %963 = vmatprep.subr.mxu0 0.0
  %964 = vmatpush1.msra.mxu0 0.0
  %965 = vmatprep.subr.mxu0 0.0
  %966 = vmatpush1.msra.mxu0 0.0
  %967 = vmatprep.subr.mxu0 0.0
  %968 = vmatpush1.msra.mxu0 0.0
  %969 = vmatprep.subr.mxu0 0.0
  %970 = vmatpush1.msra.mxu0 0.0
  %971 = vmatprep.subr.mxu0 0.0
  %972 = vmatpush1.msra.mxu0 0.0
  %973 = vmatprep.subr.mxu0 0.0
  %974 = vmatpush1.msra.mxu0 0.0
  %975 = vmatprep.subr.mxu0 0.0
  %976 = vmatpush1.msra.mxu0 0.0
  %977 = vmatprep.subr.mxu0 0.0
  %978 = vmatpush1.msra.mxu0 0.0
  %979 = vmatprep.subr.mxu0 0.0
  %980 = vmatpush1.msra.mxu0 0.0
  %981 = vmatprep.subr.mxu0 0.0
  %982 = vmatpush1.msra.mxu0 0.0
  %983 = vmatprep.subr.mxu0 0.0
  %984 = vmatpush1.msra.mxu0 0.0
  %985 = vmatprep.subr.mxu0 0.0
  %986 = vmatpush1.msra.mxu0 0.0
  %987 = vmatprep.subr.mxu0 0.0
  %988 = vmatpush1.msra.mxu0 0.0
  %989 = vmatprep.subr.mxu0 0.0
  %990 = vmatpush1.msra.mxu0 0.0
  %991 = vmatprep.mubr.f32.mxu0 0.0
  %v992 = vand.u32 %v215, 4294901760
  %993 = vmatmul.mubr.f32.gmra.mrb[0].mxu0 %v992
  %v994 = vpop.f32.mrb[0].mxu0
  %v995 = vadd.f32 %v886, %v994
  %v996 = vpop.f32.mrb[0].mxu0
  %v997 = vadd.f32 %v888, %v996
  %998 = vmatprep.mubr.f32.mxu0 0.0
  %v999 = vand.u32 %v218, 4294901760
  %1000 = vmatmul.mubr.f32.gmra.mrb[0].mxu0 %v999
  %v1001 = vpop.f32.mrb[0].mxu0
  %v1002 = vadd.f32 %v893, %v1001
  %v1003 = vpop.f32.mrb[0].mxu0
  %v1004 = vadd.f32 %v895, %v1003
  %1005 = vmatprep.mubr.f32.mxu0 0.0
  %v1006 = vand.u32 %v221, 4294901760
  %1007 = vmatmul.mubr.f32.gmra.mrb[0].mxu0 %v1006
  %v1008 = vpop.f32.mrb[0].mxu0
  %v1009 = vadd.f32 %v900, %v1008
  %v1010 = vpop.f32.mrb[0].mxu0
  %v1011 = vadd.f32 %v902, %v1010
  %1012 = vmatprep.mubr.f32.mxu0 0.0
  %v1013 = vand.u32 %v224, 4294901760
  %1014 = vmatmul.mubr.f32.gmra.mrb[0].mxu0 %v1013
  %v1015 = vpop.f32.mrb[0].mxu0
  %v1016 = vadd.f32 %v907, %v1015
  %v1017 = vpop.f32.mrb[0].mxu0
  %v1018 = vadd.f32 %v909, %v1017
  %1019 = vdwg.mxu0
  %v1020 = vand.u32 %v109, 4294901760
  %1021 = vmatprep.subr.mxu0 %v1020
  %v1022 = vand.u32 %v108, 4294901760
  %1023 = vmatpush1.msra.mxu0 %v1022
  %v1024 = vand.u32 %v111, 4294901760
  %1025 = vmatprep.subr.mxu0 %v1024
  %v1026 = vand.u32 %v110, 4294901760
  %1027 = vmatpush1.msra.mxu0 %v1026
  %v1028 = vand.u32 %v163, 4294901760
  %1029 = vmatprep.subr.mxu0 %v1028
  %v1030 = vand.u32 %v161, 4294901760
  %1031 = vmatpush1.msra.mxu0 %v1030
  %v1032 = vand.u32 %v164, 4294901760
  %1033 = vmatprep.subr.mxu0 %v1032
  %v1034 = vand.u32 %v162, 4294901760
  %1035 = vmatpush1.msra.mxu0 %v1034
  %v1036 = vand.u32 %v175, 4294901760
  %1037 = vmatprep.subr.mxu0 %v1036
  %v1038 = vand.u32 %v173, 4294901760
  %1039 = vmatpush1.msra.mxu0 %v1038
  %v1040 = vand.u32 %v176, 4294901760
  %1041 = vmatprep.subr.mxu0 %v1040
  %v1042 = vand.u32 %v174, 4294901760
  %1043 = vmatpush1.msra.mxu0 %v1042
  %v1044 = vand.u32 %v187, 4294901760
  %1045 = vmatprep.subr.mxu0 %v1044
  %v1046 = vand.u32 %v185, 4294901760
  %1047 = vmatpush1.msra.mxu0 %v1046
  %v1048 = vand.u32 %v188, 4294901760
  %1049 = vmatprep.subr.mxu0 %v1048
  %v1050 = vand.u32 %v186, 4294901760
  %1051 = vmatpush1.msra.mxu0 %v1050
  %1052 = vmatprep.subr.mxu0 0.0
  %1053 = vmatpush1.msra.mxu0 0.0
  %1054 = vmatprep.subr.mxu0 0.0
  %1055 = vmatpush1.msra.mxu0 0.0
  %1056 = vmatprep.subr.mxu0 0.0
  %1057 = vmatpush1.msra.mxu0 0.0
  %1058 = vmatprep.subr.mxu0 0.0
  %1059 = vmatpush1.msra.mxu0 0.0
  %1060 = vmatprep.subr.mxu0 0.0
  %1061 = vmatpush1.msra.mxu0 0.0
  %1062 = vmatprep.subr.mxu0 0.0
  %1063 = vmatpush1.msra.mxu0 0.0
  %1064 = vmatprep.subr.mxu0 0.0
  %1065 = vmatpush1.msra.mxu0 0.0
  %1066 = vmatprep.subr.mxu0 0.0
  %1067 = vmatpush1.msra.mxu0 0.0
  %1068 = vmatprep.subr.mxu0 0.0
  %1069 = vmatpush1.msra.mxu0 0.0
  %1070 = vmatprep.subr.mxu0 0.0
  %1071 = vmatpush1.msra.mxu0 0.0
  %1072 = vmatprep.subr.mxu0 0.0
  %1073 = vmatpush1.msra.mxu0 0.0
  %1074 = vmatprep.subr.mxu0 0.0
  %1075 = vmatpush1.msra.mxu0 0.0
  %1076 = vmatprep.subr.mxu0 0.0
  %1077 = vmatpush1.msra.mxu0 0.0
  %1078 = vmatprep.subr.mxu0 0.0
  %1079 = vmatpush1.msra.mxu0 0.0
  %1080 = vmatprep.subr.mxu0 0.0
  %1081 = vmatpush1.msra.mxu0 0.0
  %1082 = vmatprep.subr.mxu0 0.0
  %1083 = vmatpush1.msra.mxu0 0.0
  %1084 = vmatprep.subr.mxu0 0.0
  %1085 = vmatpush1.msra.mxu0 0.0
  %1086 = vmatprep.subr.mxu0 0.0
  %1087 = vmatpush1.msra.mxu0 0.0
  %1088 = vmatprep.subr.mxu0 0.0
  %1089 = vmatpush1.msra.mxu0 0.0
  %1090 = vmatprep.subr.mxu0 0.0
  %1091 = vmatpush1.msra.mxu0 0.0
  %1092 = vmatprep.subr.mxu0 0.0
  %1093 = vmatpush1.msra.mxu0 0.0
  %1094 = vmatprep.subr.mxu0 0.0
  %1095 = vmatpush1.msra.mxu0 0.0
  %1096 = vmatprep.subr.mxu0 0.0
  %1097 = vmatpush1.msra.mxu0 0.0
  %1098 = vmatprep.subr.mxu0 0.0
  %1099 = vmatpush1.msra.mxu0 0.0
  %1100 = vmatprep.mubr.f32.mxu0 0.0
  %v1101 = vand.u32 %v215, 4294901760
  %v1102 = vsub.f32 %v215, %v1101
  %v1103 = vand.u32 %v1102, 4294901760
  %v1104 = vsub.f32 %v1102, %v1103
  %v1105 = vand.u32 %v1104, 4294901760
  %1106 = vmatmul.mubr.f32.gmra.mrb[0].mxu0 %v1105
  %v1107 = vpop.f32.mrb[0].mxu0
  %v1108 = vadd.f32 %v196, %v1107
  %v1109 = vpop.f32.mrb[0].mxu0
  %v1110 = vadd.f32 %v196, %v1109
  %1111 = vmatprep.mubr.f32.mxu0 0.0
  %v1112 = vand.u32 %v218, 4294901760
  %v1113 = vsub.f32 %v218, %v1112
  %v1114 = vand.u32 %v1113, 4294901760
  %v1115 = vsub.f32 %v1113, %v1114
  %v1116 = vand.u32 %v1115, 4294901760
  %1117 = vmatmul.mubr.f32.gmra.mrb[0].mxu0 %v1116
  %v1118 = vpop.f32.mrb[0].mxu0
  %v1119 = vadd.f32 %v201, %v1118
  %v1120 = vpop.f32.mrb[0].mxu0
  %v1121 = vadd.f32 %v201, %v1120
  %1122 = vmatprep.mubr.f32.mxu0 0.0
  %v1123 = vand.u32 %v221, 4294901760
  %v1124 = vsub.f32 %v221, %v1123
  %v1125 = vand.u32 %v1124, 4294901760
  %v1126 = vsub.f32 %v1124, %v1125
  %v1127 = vand.u32 %v1126, 4294901760
  %1128 = vmatmul.mubr.f32.gmra.mrb[0].mxu0 %v1127
  %v1129 = vpop.f32.mrb[0].mxu0
  %v1130 = vadd.f32 %v206, %v1129
  %v1131 = vpop.f32.mrb[0].mxu0
  %v1132 = vadd.f32 %v206, %v1131
  %1133 = vmatprep.mubr.f32.mxu0 0.0
  %v1134 = vand.u32 %v224, 4294901760
  %v1135 = vsub.f32 %v224, %v1134
  %v1136 = vand.u32 %v1135, 4294901760
  %v1137 = vsub.f32 %v1135, %v1136
  %v1138 = vand.u32 %v1137, 4294901760
  %1139 = vmatmul.mubr.f32.gmra.mrb[0].mxu0 %v1138
  %v1140 = vpop.f32.mrb[0].mxu0
  %v1141 = vadd.f32 %v211, %v1140
  %v1142 = vpop.f32.mrb[0].mxu0
  %v1143 = vadd.f32 %v211, %v1142
  %1144 = vdwg.mxu0
  %v1145 = vand.u32 %v109, 4294901760
  %v1146 = vsub.f32 %v109, %v1145
  %v1147 = vand.u32 %v1146, 4294901760
  %v1148 = vsub.f32 %v1146, %v1147
  %v1149 = vand.u32 %v1148, 4294901760
  %1150 = vmatprep.subr.mxu0 %v1149
  %v1151 = vand.u32 %v108, 4294901760
  %v1152 = vsub.f32 %v108, %v1151
  %v1153 = vand.u32 %v1152, 4294901760
  %v1154 = vsub.f32 %v1152, %v1153
  %v1155 = vand.u32 %v1154, 4294901760
  %1156 = vmatpush1.msra.mxu0 %v1155
  %v1157 = vand.u32 %v111, 4294901760
  %v1158 = vsub.f32 %v111, %v1157
  %v1159 = vand.u32 %v1158, 4294901760
  %v1160 = vsub.f32 %v1158, %v1159
  %v1161 = vand.u32 %v1160, 4294901760
  %1162 = vmatprep.subr.mxu0 %v1161
  %v1163 = vand.u32 %v110, 4294901760
  %v1164 = vsub.f32 %v110, %v1163
  %v1165 = vand.u32 %v1164, 4294901760
  %v1166 = vsub.f32 %v1164, %v1165
  %v1167 = vand.u32 %v1166, 4294901760
  %1168 = vmatpush1.msra.mxu0 %v1167
  %v1169 = vand.u32 %v163, 4294901760
  %v1170 = vsub.f32 %v163, %v1169
  %v1171 = vand.u32 %v1170, 4294901760
  %v1172 = vsub.f32 %v1170, %v1171
  %v1173 = vand.u32 %v1172, 4294901760
  %1174 = vmatprep.subr.mxu0 %v1173
  %v1175 = vand.u32 %v161, 4294901760
  %v1176 = vsub.f32 %v161, %v1175
  %v1177 = vand.u32 %v1176, 4294901760
  %v1178 = vsub.f32 %v1176, %v1177
  %v1179 = vand.u32 %v1178, 4294901760
  %1180 = vmatpush1.msra.mxu0 %v1179
  %v1181 = vand.u32 %v164, 4294901760
  %v1182 = vsub.f32 %v164, %v1181
  %v1183 = vand.u32 %v1182, 4294901760
  %v1184 = vsub.f32 %v1182, %v1183
  %v1185 = vand.u32 %v1184, 4294901760
  %1186 = vmatprep.subr.mxu0 %v1185
  %v1187 = vand.u32 %v162, 4294901760
  %v1188 = vsub.f32 %v162, %v1187
  %v1189 = vand.u32 %v1188, 4294901760
  %v1190 = vsub.f32 %v1188, %v1189
  %v1191 = vand.u32 %v1190, 4294901760
  %1192 = vmatpush1.msra.mxu0 %v1191
  %v1193 = vand.u32 %v175, 4294901760
  %v1194 = vsub.f32 %v175, %v1193
  %v1195 = vand.u32 %v1194, 4294901760
  %v1196 = vsub.f32 %v1194, %v1195
  %v1197 = vand.u32 %v1196, 4294901760
  %1198 = vmatprep.subr.mxu0 %v1197
  %v1199 = vand.u32 %v173, 4294901760
  %v1200 = vsub.f32 %v173, %v1199
  %v1201 = vand.u32 %v1200, 4294901760
  %v1202 = vsub.f32 %v1200, %v1201
  %v1203 = vand.u32 %v1202, 4294901760
  %1204 = vmatpush1.msra.mxu0 %v1203
  %v1205 = vand.u32 %v176, 4294901760
  %v1206 = vsub.f32 %v176, %v1205
  %v1207 = vand.u32 %v1206, 4294901760
  %v1208 = vsub.f32 %v1206, %v1207
  %v1209 = vand.u32 %v1208, 4294901760
  %1210 = vmatprep.subr.mxu0 %v1209
  %v1211 = vand.u32 %v174, 4294901760
  %v1212 = vsub.f32 %v174, %v1211
  %v1213 = vand.u32 %v1212, 4294901760
  %v1214 = vsub.f32 %v1212, %v1213
  %v1215 = vand.u32 %v1214, 4294901760
  %1216 = vmatpush1.msra.mxu0 %v1215
  %v1217 = vand.u32 %v187, 4294901760
  %v1218 = vsub.f32 %v187, %v1217
  %v1219 = vand.u32 %v1218, 4294901760
  %v1220 = vsub.f32 %v1218, %v1219
  %v1221 = vand.u32 %v1220, 4294901760
  %1222 = vmatprep.subr.mxu0 %v1221
  %v1223 = vand.u32 %v185, 4294901760
  %v1224 = vsub.f32 %v185, %v1223
  %v1225 = vand.u32 %v1224, 4294901760
  %v1226 = vsub.f32 %v1224, %v1225
  %v1227 = vand.u32 %v1226, 4294901760
  %1228 = vmatpush1.msra.mxu0 %v1227
  %v1229 = vand.u32 %v188, 4294901760
  %v1230 = vsub.f32 %v188, %v1229
  %v1231 = vand.u32 %v1230, 4294901760
  %v1232 = vsub.f32 %v1230, %v1231
  %v1233 = vand.u32 %v1232, 4294901760
  %1234 = vmatprep.subr.mxu0 %v1233
  %v1235 = vand.u32 %v186, 4294901760
  %v1236 = vsub.f32 %v186, %v1235
  %v1237 = vand.u32 %v1236, 4294901760
  %v1238 = vsub.f32 %v1236, %v1237
  %v1239 = vand.u32 %v1238, 4294901760
  %1240 = vmatpush1.msra.mxu0 %v1239
  %1241 = vmatprep.subr.mxu0 0.0
  %1242 = vmatpush1.msra.mxu0 0.0
  %1243 = vmatprep.subr.mxu0 0.0
  %1244 = vmatpush1.msra.mxu0 0.0
  %1245 = vmatprep.subr.mxu0 0.0
  %1246 = vmatpush1.msra.mxu0 0.0
  %1247 = vmatprep.subr.mxu0 0.0
  %1248 = vmatpush1.msra.mxu0 0.0
  %1249 = vmatprep.subr.mxu0 0.0
  %1250 = vmatpush1.msra.mxu0 0.0
  %1251 = vmatprep.subr.mxu0 0.0
  %1252 = vmatpush1.msra.mxu0 0.0
  %1253 = vmatprep.subr.mxu0 0.0
  %1254 = vmatpush1.msra.mxu0 0.0
  %1255 = vmatprep.subr.mxu0 0.0
  %1256 = vmatpush1.msra.mxu0 0.0
  %1257 = vmatprep.subr.mxu0 0.0
  %1258 = vmatpush1.msra.mxu0 0.0
  %1259 = vmatprep.subr.mxu0 0.0
  %1260 = vmatpush1.msra.mxu0 0.0
  %1261 = vmatprep.subr.mxu0 0.0
  %1262 = vmatpush1.msra.mxu0 0.0
  %1263 = vmatprep.subr.mxu0 0.0
  %1264 = vmatpush1.msra.mxu0 0.0
  %1265 = vmatprep.subr.mxu0 0.0
  %1266 = vmatpush1.msra.mxu0 0.0
  %1267 = vmatprep.subr.mxu0 0.0
  %1268 = vmatpush1.msra.mxu0 0.0
  %1269 = vmatprep.subr.mxu0 0.0
  %1270 = vmatpush1.msra.mxu0 0.0
  %1271 = vmatprep.subr.mxu0 0.0
  %1272 = vmatpush1.msra.mxu0 0.0
  %1273 = vmatprep.subr.mxu0 0.0
  %1274 = vmatpush1.msra.mxu0 0.0
  %1275 = vmatprep.subr.mxu0 0.0
  %1276 = vmatpush1.msra.mxu0 0.0
  %1277 = vmatprep.subr.mxu0 0.0
  %1278 = vmatpush1.msra.mxu0 0.0
  %1279 = vmatprep.subr.mxu0 0.0
  %1280 = vmatpush1.msra.mxu0 0.0
  %1281 = vmatprep.subr.mxu0 0.0
  %1282 = vmatpush1.msra.mxu0 0.0
  %1283 = vmatprep.subr.mxu0 0.0
  %1284 = vmatpush1.msra.mxu0 0.0
  %1285 = vmatprep.subr.mxu0 0.0
  %1286 = vmatpush1.msra.mxu0 0.0
  %1287 = vmatprep.subr.mxu0 0.0
  %1288 = vmatpush1.msra.mxu0 0.0
  %1289 = vmatprep.mubr.f32.mxu0 0.0
  %v1290 = vand.u32 %v215, 4294901760
  %1291 = vmatmul.mubr.f32.gmra.mrb[0].mxu0 %v1290
  %v1292 = vpop.f32.mrb[0].mxu0
  %v1293 = vadd.f32 %v1108, %v1292
  %v1294 = vpop.f32.mrb[0].mxu0
  %v1295 = vadd.f32 %v1110, %v1294
  %1296 = vmatprep.mubr.f32.mxu0 0.0
  %v1297 = vand.u32 %v218, 4294901760
  %1298 = vmatmul.mubr.f32.gmra.mrb[0].mxu0 %v1297
  %v1299 = vpop.f32.mrb[0].mxu0
  %v1300 = vadd.f32 %v1119, %v1299
  %v1301 = vpop.f32.mrb[0].mxu0
  %v1302 = vadd.f32 %v1121, %v1301
  %1303 = vmatprep.mubr.f32.mxu0 0.0
  %v1304 = vand.u32 %v221, 4294901760
  %1305 = vmatmul.mubr.f32.gmra.mrb[0].mxu0 %v1304
  %v1306 = vpop.f32.mrb[0].mxu0
  %v1307 = vadd.f32 %v1130, %v1306
  %v1308 = vpop.f32.mrb[0].mxu0
  %v1309 = vadd.f32 %v1132, %v1308
  %1310 = vmatprep.mubr.f32.mxu0 0.0
  %v1311 = vand.u32 %v224, 4294901760
  %1312 = vmatmul.mubr.f32.gmra.mrb[0].mxu0 %v1311
  %v1313 = vpop.f32.mrb[0].mxu0
  %v1314 = vadd.f32 %v1141, %v1313
  %v1315 = vpop.f32.mrb[0].mxu0
  %v1316 = vadd.f32 %v1143, %v1315
  %1317 = vdwg.mxu0
  %v1318 = vand.u32 %v109, 4294901760
  %v1319 = vsub.f32 %v109, %v1318
  %1320 = vmatprep.subr.mxu0 %v1319
  %v1321 = vand.u32 %v108, 4294901760
  %v1322 = vsub.f32 %v108, %v1321
  %1323 = vmatpush1.msra.mxu0 %v1322
  %v1324 = vand.u32 %v111, 4294901760
  %v1325 = vsub.f32 %v111, %v1324
  %1326 = vmatprep.subr.mxu0 %v1325
  %v1327 = vand.u32 %v110, 4294901760
  %v1328 = vsub.f32 %v110, %v1327
  %1329 = vmatpush1.msra.mxu0 %v1328
  %v1330 = vand.u32 %v163, 4294901760
  %v1331 = vsub.f32 %v163, %v1330
  %1332 = vmatprep.subr.mxu0 %v1331
  %v1333 = vand.u32 %v161, 4294901760
  %v1334 = vsub.f32 %v161, %v1333
  %1335 = vmatpush1.msra.mxu0 %v1334
  %v1336 = vand.u32 %v164, 4294901760
  %v1337 = vsub.f32 %v164, %v1336
  %1338 = vmatprep.subr.mxu0 %v1337
  %v1339 = vand.u32 %v162, 4294901760
  %v1340 = vsub.f32 %v162, %v1339
  %1341 = vmatpush1.msra.mxu0 %v1340
  %v1342 = vand.u32 %v175, 4294901760
  %v1343 = vsub.f32 %v175, %v1342
  %1344 = vmatprep.subr.mxu0 %v1343
  %v1345 = vand.u32 %v173, 4294901760
  %v1346 = vsub.f32 %v173, %v1345
  %1347 = vmatpush1.msra.mxu0 %v1346
  %v1348 = vand.u32 %v176, 4294901760
  %v1349 = vsub.f32 %v176, %v1348
  %1350 = vmatprep.subr.mxu0 %v1349
  %v1351 = vand.u32 %v174, 4294901760
  %v1352 = vsub.f32 %v174, %v1351
  %1353 = vmatpush1.msra.mxu0 %v1352
  %v1354 = vand.u32 %v187, 4294901760
  %v1355 = vsub.f32 %v187, %v1354
  %1356 = vmatprep.subr.mxu0 %v1355
  %v1357 = vand.u32 %v185, 4294901760
  %v1358 = vsub.f32 %v185, %v1357
  %1359 = vmatpush1.msra.mxu0 %v1358
  %v1360 = vand.u32 %v188, 4294901760
  %v1361 = vsub.f32 %v188, %v1360
  %1362 = vmatprep.subr.mxu0 %v1361
  %v1363 = vand.u32 %v186, 4294901760
  %v1364 = vsub.f32 %v186, %v1363
  %1365 = vmatpush1.msra.mxu0 %v1364
  %1366 = vmatprep.subr.mxu0 0.0
  %1367 = vmatpush1.msra.mxu0 0.0
  %1368 = vmatprep.subr.mxu0 0.0
  %1369 = vmatpush1.msra.mxu0 0.0
  %1370 = vmatprep.subr.mxu0 0.0
  %1371 = vmatpush1.msra.mxu0 0.0
  %1372 = vmatprep.subr.mxu0 0.0
  %1373 = vmatpush1.msra.mxu0 0.0
  %1374 = vmatprep.subr.mxu0 0.0
  %1375 = vmatpush1.msra.mxu0 0.0
  %1376 = vmatprep.subr.mxu0 0.0
  %1377 = vmatpush1.msra.mxu0 0.0
  %1378 = vmatprep.subr.mxu0 0.0
  %1379 = vmatpush1.msra.mxu0 0.0
  %1380 = vmatprep.subr.mxu0 0.0
  %1381 = vmatpush1.msra.mxu0 0.0
  %1382 = vmatprep.subr.mxu0 0.0
  %1383 = vmatpush1.msra.mxu0 0.0
  %1384 = vmatprep.subr.mxu0 0.0
  %1385 = vmatpush1.msra.mxu0 0.0
  %1386 = vmatprep.subr.mxu0 0.0
  %1387 = vmatpush1.msra.mxu0 0.0
  %1388 = vmatprep.subr.mxu0 0.0
  %1389 = vmatpush1.msra.mxu0 0.0
  %1390 = vmatprep.subr.mxu0 0.0
  %1391 = vmatpush1.msra.mxu0 0.0
  %1392 = vmatprep.subr.mxu0 0.0
  %1393 = vmatpush1.msra.mxu0 0.0
  %1394 = vmatprep.subr.mxu0 0.0
  %1395 = vmatpush1.msra.mxu0 0.0
  %1396 = vmatprep.subr.mxu0 0.0
  %1397 = vmatpush1.msra.mxu0 0.0
  %1398 = vmatprep.subr.mxu0 0.0
  %1399 = vmatpush1.msra.mxu0 0.0
  %1400 = vmatprep.subr.mxu0 0.0
  %1401 = vmatpush1.msra.mxu0 0.0
  %1402 = vmatprep.subr.mxu0 0.0
  %1403 = vmatpush1.msra.mxu0 0.0
  %1404 = vmatprep.subr.mxu0 0.0
  %1405 = vmatpush1.msra.mxu0 0.0
  %1406 = vmatprep.subr.mxu0 0.0
  %1407 = vmatpush1.msra.mxu0 0.0
  %1408 = vmatprep.subr.mxu0 0.0
  %1409 = vmatpush1.msra.mxu0 0.0
  %1410 = vmatprep.subr.mxu0 0.0
  %1411 = vmatpush1.msra.mxu0 0.0
  %1412 = vmatprep.subr.mxu0 0.0
  %1413 = vmatpush1.msra.mxu0 0.0
  %1414 = vmatprep.mubr.f32.mxu0 0.0
  %v1415 = vand.u32 %v215, 4294901760
  %v1416 = vsub.f32 %v215, %v1415
  %1417 = vmatmul.mubr.f32.gmra.mrb[0].mxu0 %v1416
  %v1418 = vpop.f32.mrb[0].mxu0
  %v1419 = vadd.f32 %v1293, %v1418
  %v1420 = vpop.f32.mrb[0].mxu0
  %v1421 = vadd.f32 %v1295, %v1420
  %1422 = vmatprep.mubr.f32.mxu0 0.0
  %v1423 = vand.u32 %v218, 4294901760
  %v1424 = vsub.f32 %v218, %v1423
  %1425 = vmatmul.mubr.f32.gmra.mrb[0].mxu0 %v1424
  %v1426 = vpop.f32.mrb[0].mxu0
  %v1427 = vadd.f32 %v1300, %v1426
  %v1428 = vpop.f32.mrb[0].mxu0
  %v1429 = vadd.f32 %v1302, %v1428
  %1430 = vmatprep.mubr.f32.mxu0 0.0
  %v1431 = vand.u32 %v221, 4294901760
  %v1432 = vsub.f32 %v221, %v1431
  %1433 = vmatmul.mubr.f32.gmra.mrb[0].mxu0 %v1432
  %v1434 = vpop.f32.mrb[0].mxu0
  %v1435 = vadd.f32 %v1307, %v1434
  %v1436 = vpop.f32.mrb[0].mxu0
  %v1437 = vadd.f32 %v1309, %v1436
  %1438 = vmatprep.mubr.f32.mxu0 0.0
  %v1439 = vand.u32 %v224, 4294901760
  %v1440 = vsub.f32 %v224, %v1439
  %1441 = vmatmul.mubr.f32.gmra.mrb[0].mxu0 %v1440
  %v1442 = vpop.f32.mrb[0].mxu0
  %v1443 = vadd.f32 %v1314, %v1442
  %v1444 = vpop.f32.mrb[0].mxu0
  %v1445 = vadd.f32 %v1316, %v1444
  %1446 = vdwg.mxu0
  %v1447 = vand.u32 %v109, 4294901760
  %1448 = vmatprep.subr.mxu0 %v1447
  %v1449 = vand.u32 %v108, 4294901760
  %1450 = vmatpush1.msra.mxu0 %v1449
  %v1451 = vand.u32 %v111, 4294901760
  %1452 = vmatprep.subr.mxu0 %v1451
  %v1453 = vand.u32 %v110, 4294901760
  %1454 = vmatpush1.msra.mxu0 %v1453
  %v1455 = vand.u32 %v163, 4294901760
  %1456 = vmatprep.subr.mxu0 %v1455
  %v1457 = vand.u32 %v161, 4294901760
  %1458 = vmatpush1.msra.mxu0 %v1457
  %v1459 = vand.u32 %v164, 4294901760
  %1460 = vmatprep.subr.mxu0 %v1459
  %v1461 = vand.u32 %v162, 4294901760
  %1462 = vmatpush1.msra.mxu0 %v1461
  %v1463 = vand.u32 %v175, 4294901760
  %1464 = vmatprep.subr.mxu0 %v1463
  %v1465 = vand.u32 %v173, 4294901760
  %1466 = vmatpush1.msra.mxu0 %v1465
  %v1467 = vand.u32 %v176, 4294901760
  %1468 = vmatprep.subr.mxu0 %v1467
  %v1469 = vand.u32 %v174, 4294901760
  %1470 = vmatpush1.msra.mxu0 %v1469
  %v1471 = vand.u32 %v187, 4294901760
  %1472 = vmatprep.subr.mxu0 %v1471
  %v1473 = vand.u32 %v185, 4294901760
  %1474 = vmatpush1.msra.mxu0 %v1473
  %v1475 = vand.u32 %v188, 4294901760
  %1476 = vmatprep.subr.mxu0 %v1475
  %v1477 = vand.u32 %v186, 4294901760
  %1478 = vmatpush1.msra.mxu0 %v1477
  %1479 = vmatprep.subr.mxu0 0.0
  %1480 = vmatpush1.msra.mxu0 0.0
  %1481 = vmatprep.subr.mxu0 0.0
  %1482 = vmatpush1.msra.mxu0 0.0
  %1483 = vmatprep.subr.mxu0 0.0
  %1484 = vmatpush1.msra.mxu0 0.0
  %1485 = vmatprep.subr.mxu0 0.0
  %1486 = vmatpush1.msra.mxu0 0.0
  %1487 = vmatprep.subr.mxu0 0.0
  %1488 = vmatpush1.msra.mxu0 0.0
  %1489 = vmatprep.subr.mxu0 0.0
  %1490 = vmatpush1.msra.mxu0 0.0
  %1491 = vmatprep.subr.mxu0 0.0
  %1492 = vmatpush1.msra.mxu0 0.0
  %1493 = vmatprep.subr.mxu0 0.0
  %1494 = vmatpush1.msra.mxu0 0.0
  %1495 = vmatprep.subr.mxu0 0.0
  %1496 = vmatpush1.msra.mxu0 0.0
  %1497 = vmatprep.subr.mxu0 0.0
  %1498 = vmatpush1.msra.mxu0 0.0
  %1499 = vmatprep.subr.mxu0 0.0
  %1500 = vmatpush1.msra.mxu0 0.0
  %1501 = vmatprep.subr.mxu0 0.0
  %1502 = vmatpush1.msra.mxu0 0.0
  %1503 = vmatprep.subr.mxu0 0.0
  %1504 = vmatpush1.msra.mxu0 0.0
  %1505 = vmatprep.subr.mxu0 0.0
  %1506 = vmatpush1.msra.mxu0 0.0
  %1507 = vmatprep.subr.mxu0 0.0
  %1508 = vmatpush1.msra.mxu0 0.0
  %1509 = vmatprep.subr.mxu0 0.0
  %1510 = vmatpush1.msra.mxu0 0.0
  %1511 = vmatprep.subr.mxu0 0.0
  %1512 = vmatpush1.msra.mxu0 0.0
  %1513 = vmatprep.subr.mxu0 0.0
  %1514 = vmatpush1.msra.mxu0 0.0
  %1515 = vmatprep.subr.mxu0 0.0
  %1516 = vmatpush1.msra.mxu0 0.0
  %1517 = vmatprep.subr.mxu0 0.0
  %1518 = vmatpush1.msra.mxu0 0.0
  %1519 = vmatprep.subr.mxu0 0.0
  %1520 = vmatpush1.msra.mxu0 0.0
  %1521 = vmatprep.subr.mxu0 0.0
  %1522 = vmatpush1.msra.mxu0 0.0
  %1523 = vmatprep.subr.mxu0 0.0
  %1524 = vmatpush1.msra.mxu0 0.0
  %1525 = vmatprep.subr.mxu0 0.0
  %1526 = vmatpush1.msra.mxu0 0.0
  %1527 = vmatprep.mubr.f32.mxu0 0.0
  %v1528 = vand.u32 %v215, 4294901760
  %v1529 = vsub.f32 %v215, %v1528
  %v1530 = vand.u32 %v1529, 4294901760
  %1531 = vmatmul.mubr.f32.gmra.mrb[0].mxu0 %v1530
  %v1532 = vpop.f32.mrb[0].mxu0
  %v1533 = vadd.f32 %v1419, %v1532
  %v1534 = vpop.f32.mrb[0].mxu0
  %v1535 = vadd.f32 %v1421, %v1534
  %1536 = vmatprep.mubr.f32.mxu0 0.0
  %v1537 = vand.u32 %v218, 4294901760
  %v1538 = vsub.f32 %v218, %v1537
  %v1539 = vand.u32 %v1538, 4294901760
  %1540 = vmatmul.mubr.f32.gmra.mrb[0].mxu0 %v1539
  %v1541 = vpop.f32.mrb[0].mxu0
  %v1542 = vadd.f32 %v1427, %v1541
  %v1543 = vpop.f32.mrb[0].mxu0
  %v1544 = vadd.f32 %v1429, %v1543
  %1545 = vmatprep.mubr.f32.mxu0 0.0
  %v1546 = vand.u32 %v221, 4294901760
  %v1547 = vsub.f32 %v221, %v1546
  %v1548 = vand.u32 %v1547, 4294901760
  %1549 = vmatmul.mubr.f32.gmra.mrb[0].mxu0 %v1548
  %v1550 = vpop.f32.mrb[0].mxu0
  %v1551 = vadd.f32 %v1435, %v1550
  %v1552 = vpop.f32.mrb[0].mxu0
  %v1553 = vadd.f32 %v1437, %v1552
  %1554 = vmatprep.mubr.f32.mxu0 0.0
  %v1555 = vand.u32 %v224, 4294901760
  %v1556 = vsub.f32 %v224, %v1555
  %v1557 = vand.u32 %v1556, 4294901760
  %1558 = vmatmul.mubr.f32.gmra.mrb[0].mxu0 %v1557
  %v1559 = vpop.f32.mrb[0].mxu0
  %v1560 = vadd.f32 %v1443, %v1559
  %v1561 = vpop.f32.mrb[0].mxu0
  %v1562 = vadd.f32 %v1445, %v1561
  %1563 = vdwg.mxu0
  %v1564 = vand.u32 %v109, 4294901760
  %v1565 = vsub.f32 %v109, %v1564
  %v1566 = vand.u32 %v1565, 4294901760
  %1567 = vmatprep.subr.mxu0 %v1566
  %v1568 = vand.u32 %v108, 4294901760
  %v1569 = vsub.f32 %v108, %v1568
  %v1570 = vand.u32 %v1569, 4294901760
  %1571 = vmatpush1.msra.mxu0 %v1570
  %v1572 = vand.u32 %v111, 4294901760
  %v1573 = vsub.f32 %v111, %v1572
  %v1574 = vand.u32 %v1573, 4294901760
  %1575 = vmatprep.subr.mxu0 %v1574
  %v1576 = vand.u32 %v110, 4294901760
  %v1577 = vsub.f32 %v110, %v1576
  %v1578 = vand.u32 %v1577, 4294901760
  %1579 = vmatpush1.msra.mxu0 %v1578
  %v1580 = vand.u32 %v163, 4294901760
  %v1581 = vsub.f32 %v163, %v1580
  %v1582 = vand.u32 %v1581, 4294901760
  %1583 = vmatprep.subr.mxu0 %v1582
  %v1584 = vand.u32 %v161, 4294901760
  %v1585 = vsub.f32 %v161, %v1584
  %v1586 = vand.u32 %v1585, 4294901760
  %1587 = vmatpush1.msra.mxu0 %v1586
  %v1588 = vand.u32 %v164, 4294901760
  %v1589 = vsub.f32 %v164, %v1588
  %v1590 = vand.u32 %v1589, 4294901760
  %1591 = vmatprep.subr.mxu0 %v1590
  %v1592 = vand.u32 %v162, 4294901760
  %v1593 = vsub.f32 %v162, %v1592
  %v1594 = vand.u32 %v1593, 4294901760
  %1595 = vmatpush1.msra.mxu0 %v1594
  %v1596 = vand.u32 %v175, 4294901760
  %v1597 = vsub.f32 %v175, %v1596
  %v1598 = vand.u32 %v1597, 4294901760
  %1599 = vmatprep.subr.mxu0 %v1598
  %v1600 = vand.u32 %v173, 4294901760
  %v1601 = vsub.f32 %v173, %v1600
  %v1602 = vand.u32 %v1601, 4294901760
  %1603 = vmatpush1.msra.mxu0 %v1602
  %v1604 = vand.u32 %v176, 4294901760
  %v1605 = vsub.f32 %v176, %v1604
  %v1606 = vand.u32 %v1605, 4294901760
  %1607 = vmatprep.subr.mxu0 %v1606
  %v1608 = vand.u32 %v174, 4294901760
  %v1609 = vsub.f32 %v174, %v1608
  %v1610 = vand.u32 %v1609, 4294901760
  %1611 = vmatpush1.msra.mxu0 %v1610
  %v1612 = vand.u32 %v187, 4294901760
  %v1613 = vsub.f32 %v187, %v1612
  %v1614 = vand.u32 %v1613, 4294901760
  %1615 = vmatprep.subr.mxu0 %v1614
  %v1616 = vand.u32 %v185, 4294901760
  %v1617 = vsub.f32 %v185, %v1616
  %v1618 = vand.u32 %v1617, 4294901760
  %1619 = vmatpush1.msra.mxu0 %v1618
  %v1620 = vand.u32 %v188, 4294901760
  %v1621 = vsub.f32 %v188, %v1620
  %v1622 = vand.u32 %v1621, 4294901760
  %1623 = vmatprep.subr.mxu0 %v1622
  %v1624 = vand.u32 %v186, 4294901760
  %v1625 = vsub.f32 %v186, %v1624
  %v1626 = vand.u32 %v1625, 4294901760
  %1627 = vmatpush1.msra.mxu0 %v1626
  %1628 = vmatprep.subr.mxu0 0.0
  %1629 = vmatpush1.msra.mxu0 0.0
  %1630 = vmatprep.subr.mxu0 0.0
  %1631 = vmatpush1.msra.mxu0 0.0
  %1632 = vmatprep.subr.mxu0 0.0
  %1633 = vmatpush1.msra.mxu0 0.0
  %1634 = vmatprep.subr.mxu0 0.0
  %1635 = vmatpush1.msra.mxu0 0.0
  %1636 = vmatprep.subr.mxu0 0.0
  %1637 = vmatpush1.msra.mxu0 0.0
  %1638 = vmatprep.subr.mxu0 0.0
  %1639 = vmatpush1.msra.mxu0 0.0
  %1640 = vmatprep.subr.mxu0 0.0
  %1641 = vmatpush1.msra.mxu0 0.0
  %1642 = vmatprep.subr.mxu0 0.0
  %1643 = vmatpush1.msra.mxu0 0.0
  %1644 = vmatprep.subr.mxu0 0.0
  %1645 = vmatpush1.msra.mxu0 0.0
  %1646 = vmatprep.subr.mxu0 0.0
  %1647 = vmatpush1.msra.mxu0 0.0
  %1648 = vmatprep.subr.mxu0 0.0
  %1649 = vmatpush1.msra.mxu0 0.0
  %1650 = vmatprep.subr.mxu0 0.0
  %1651 = vmatpush1.msra.mxu0 0.0
  %1652 = vmatprep.subr.mxu0 0.0
  %1653 = vmatpush1.msra.mxu0 0.0
  %1654 = vmatprep.subr.mxu0 0.0
  %1655 = vmatpush1.msra.mxu0 0.0
  %1656 = vmatprep.subr.mxu0 0.0
  %1657 = vmatpush1.msra.mxu0 0.0
  %1658 = vmatprep.subr.mxu0 0.0
  %1659 = vmatpush1.msra.mxu0 0.0
  %1660 = vmatprep.subr.mxu0 0.0
  %1661 = vmatpush1.msra.mxu0 0.0
  %1662 = vmatprep.subr.mxu0 0.0
  %1663 = vmatpush1.msra.mxu0 0.0
  %1664 = vmatprep.subr.mxu0 0.0
  %1665 = vmatpush1.msra.mxu0 0.0
  %1666 = vmatprep.subr.mxu0 0.0
  %1667 = vmatpush1.msra.mxu0 0.0
  %1668 = vmatprep.subr.mxu0 0.0
  %1669 = vmatpush1.msra.mxu0 0.0
  %1670 = vmatprep.subr.mxu0 0.0
  %1671 = vmatpush1.msra.mxu0 0.0
  %1672 = vmatprep.subr.mxu0 0.0
  %1673 = vmatpush1.msra.mxu0 0.0
  %1674 = vmatprep.subr.mxu0 0.0
  %1675 = vmatpush1.msra.mxu0 0.0
  %1676 = vmatprep.mubr.f32.mxu0 0.0
  %v1677 = vand.u32 %v215, 4294901760
  %1678 = vmatmul.mubr.f32.gmra.mrb[0].mxu0 %v1677
  %v1679 = vpop.f32.mrb[0].mxu0
  %v1680 = vadd.f32 %v1533, %v1679
  %v1681 = vpop.f32.mrb[0].mxu0
  %v1682 = vadd.f32 %v1535, %v1681
  %1683 = vmatprep.mubr.f32.mxu0 0.0
  %v1684 = vand.u32 %v218, 4294901760
  %1685 = vmatmul.mubr.f32.gmra.mrb[0].mxu0 %v1684
  %v1686 = vpop.f32.mrb[0].mxu0
  %v1687 = vadd.f32 %v1542, %v1686
  %v1688 = vpop.f32.mrb[0].mxu0
  %v1689 = vadd.f32 %v1544, %v1688
  %1690 = vmatprep.mubr.f32.mxu0 0.0
  %v1691 = vand.u32 %v221, 4294901760
  %1692 = vmatmul.mubr.f32.gmra.mrb[0].mxu0 %v1691
  %v1693 = vpop.f32.mrb[0].mxu0
  %v1694 = vadd.f32 %v1551, %v1693
  %v1695 = vpop.f32.mrb[0].mxu0
  %v1696 = vadd.f32 %v1553, %v1695
  %1697 = vmatprep.mubr.f32.mxu0 0.0
  %v1698 = vand.u32 %v224, 4294901760
  %1699 = vmatmul.mubr.f32.gmra.mrb[0].mxu0 %v1698
  %v1700 = vpop.f32.mrb[0].mxu0
  %v1701 = vadd.f32 %v1560, %v1700
  %v1702 = vpop.f32.mrb[0].mxu0
  %v1703 = vadd.f32 %v1562, %v1702
  %1704 = vdwg.mxu0
  %v1705 = vand.u32 %v109, 4294901760
  %1706 = vmatprep.subr.mxu0 %v1705
  %v1707 = vand.u32 %v108, 4294901760
  %1708 = vmatpush1.msra.mxu0 %v1707
  %v1709 = vand.u32 %v111, 4294901760
  %1710 = vmatprep.subr.mxu0 %v1709
  %v1711 = vand.u32 %v110, 4294901760
  %1712 = vmatpush1.msra.mxu0 %v1711
  %v1713 = vand.u32 %v163, 4294901760
  %1714 = vmatprep.subr.mxu0 %v1713
  %v1715 = vand.u32 %v161, 4294901760
  %1716 = vmatpush1.msra.mxu0 %v1715
  %v1717 = vand.u32 %v164, 4294901760
  %1718 = vmatprep.subr.mxu0 %v1717
  %v1719 = vand.u32 %v162, 4294901760
  %1720 = vmatpush1.msra.mxu0 %v1719
  %v1721 = vand.u32 %v175, 4294901760
  %1722 = vmatprep.subr.mxu0 %v1721
  %v1723 = vand.u32 %v173, 4294901760
  %1724 = vmatpush1.msra.mxu0 %v1723
  %v1725 = vand.u32 %v176, 4294901760
  %1726 = vmatprep.subr.mxu0 %v1725
  %v1727 = vand.u32 %v174, 4294901760
  %1728 = vmatpush1.msra.mxu0 %v1727
  %v1729 = vand.u32 %v187, 4294901760
  %1730 = vmatprep.subr.mxu0 %v1729
  %v1731 = vand.u32 %v185, 4294901760
  %1732 = vmatpush1.msra.mxu0 %v1731
  %v1733 = vand.u32 %v188, 4294901760
  %1734 = vmatprep.subr.mxu0 %v1733
  %v1735 = vand.u32 %v186, 4294901760
  %1736 = vmatpush1.msra.mxu0 %v1735
  %1737 = vmatprep.subr.mxu0 0.0
  %1738 = vmatpush1.msra.mxu0 0.0
  %1739 = vmatprep.subr.mxu0 0.0
  %1740 = vmatpush1.msra.mxu0 0.0
  %1741 = vmatprep.subr.mxu0 0.0
  %1742 = vmatpush1.msra.mxu0 0.0
  %1743 = vmatprep.subr.mxu0 0.0
  %1744 = vmatpush1.msra.mxu0 0.0
  %1745 = vmatprep.subr.mxu0 0.0
  %1746 = vmatpush1.msra.mxu0 0.0
  %1747 = vmatprep.subr.mxu0 0.0
  %1748 = vmatpush1.msra.mxu0 0.0
  %1749 = vmatprep.subr.mxu0 0.0
  %1750 = vmatpush1.msra.mxu0 0.0
  %1751 = vmatprep.subr.mxu0 0.0
  %1752 = vmatpush1.msra.mxu0 0.0
  %1753 = vmatprep.subr.mxu0 0.0
  %1754 = vmatpush1.msra.mxu0 0.0
  %1755 = vmatprep.subr.mxu0 0.0
  %1756 = vmatpush1.msra.mxu0 0.0
  %1757 = vmatprep.subr.mxu0 0.0
  %1758 = vmatpush1.msra.mxu0 0.0
  %1759 = vmatprep.subr.mxu0 0.0
  %1760 = vmatpush1.msra.mxu0 0.0
  %1761 = vmatprep.subr.mxu0 0.0
  %1762 = vmatpush1.msra.mxu0 0.0
  %1763 = vmatprep.subr.mxu0 0.0
  %1764 = vmatpush1.msra.mxu0 0.0
  %1765 = vmatprep.subr.mxu0 0.0
  %1766 = vmatpush1.msra.mxu0 0.0
  %1767 = vmatprep.subr.mxu0 0.0
  %1768 = vmatpush1.msra.mxu0 0.0
  %1769 = vmatprep.subr.mxu0 0.0
  %1770 = vmatpush1.msra.mxu0 0.0
  %1771 = vmatprep.subr.mxu0 0.0
  %1772 = vmatpush1.msra.mxu0 0.0
  %1773 = vmatprep.subr.mxu0 0.0
  %1774 = vmatpush1.msra.mxu0 0.0
  %1775 = vmatprep.subr.mxu0 0.0
  %1776 = vmatpush1.msra.mxu0 0.0
  %1777 = vmatprep.subr.mxu0 0.0
  %1778 = vmatpush1.msra.mxu0 0.0
  %1779 = vmatprep.subr.mxu0 0.0
  %1780 = vmatpush1.msra.mxu0 0.0
  %1781 = vmatprep.subr.mxu0 0.0
  %1782 = vmatpush1.msra.mxu0 0.0
  %1783 = vmatprep.subr.mxu0 0.0
  %1784 = vmatpush1.msra.mxu0 0.0
  %1785 = vmatprep.mubr.f32.mxu0 0.0
  %v1786 = vand.u32 %v215, 4294901760
  %1787 = vmatmul.mubr.f32.gmra.mrb[0].mxu0 %v1786
  %v1788 = vpop.f32.mrb[0].mxu0
  %v1789 = vadd.f32 %v1680, %v1788
  %v1790 = vpop.f32.mrb[0].mxu0
  %v1791 = vadd.f32 %v1682, %v1790
  %1792 = vmatprep.mubr.f32.mxu0 0.0
  %v1793 = vand.u32 %v218, 4294901760
  %1794 = vmatmul.mubr.f32.gmra.mrb[0].mxu0 %v1793
  %v1795 = vpop.f32.mrb[0].mxu0
  %v1796 = vadd.f32 %v1687, %v1795
  %v1797 = vpop.f32.mrb[0].mxu0
  %v1798 = vadd.f32 %v1689, %v1797
  %1799 = vmatprep.mubr.f32.mxu0 0.0
  %v1800 = vand.u32 %v221, 4294901760
  %1801 = vmatmul.mubr.f32.gmra.mrb[0].mxu0 %v1800
  %v1802 = vpop.f32.mrb[0].mxu0
  %v1803 = vadd.f32 %v1694, %v1802
  %v1804 = vpop.f32.mrb[0].mxu0
  %v1805 = vadd.f32 %v1696, %v1804
  %1806 = vmatprep.mubr.f32.mxu0 0.0
  %v1807 = vand.u32 %v224, 4294901760
  %1808 = vmatmul.mubr.f32.gmra.mrb[0].mxu0 %v1807
  %v1809 = vpop.f32.mrb[0].mxu0
  %v1810 = vadd.f32 %v1701, %v1809
  %v1811 = vpop.f32.mrb[0].mxu0
  %v1812 = vadd.f32 %v1703, %v1811
  %1813 = vdwg.mxu0
  %1814 = vst [vmem:[%s3] sm:$0xff] %v995
  %1815 = vst [vmem:[%s3 + $0x8] sm:$0xff] %v997
  %1816 = vst [vmem:[%s3 + $0x10] sm:$0xff] %v1002
  %1817 = vst [vmem:[%s3 + $0x18] sm:$0xff] %v1004
  %1818 = vst [vmem:[%s3 + $0x20] sm:$0xff] %v1009
  %1819 = vst [vmem:[%s3 + $0x28] sm:$0xff] %v1011
  %1820 = vst [vmem:[%s3 + $0x30] sm:$0xff] %v1016
  %1821 = vst [vmem:[%s3 + $0x38] sm:$0xff] %v1018
  %s1822 = scalar_lea.vmem %s3, 64
  %1823 = vst [vmem:[%s1822] sm:$0xff] %v1789
  %1824 = vst [vmem:[%s1822 + $0x8] sm:$0xff] %v1791
  %1825 = vst [vmem:[%s1822 + $0x10] sm:$0xff] %v1796
  %1826 = vst [vmem:[%s1822 + $0x18] sm:$0xff] %v1798
  %1827 = vst [vmem:[%s1822 + $0x20] sm:$0xff] %v1803
  %1828 = vst [vmem:[%s1822 + $0x28] sm:$0xff] %v1805
  %1829 = vst [vmem:[%s1822 + $0x30] sm:$0xff] %v1810
  %1830 = vst [vmem:[%s1822 + $0x38] sm:$0xff] %v1812
  // Predicated region
  $region14: #{bn_conv_forward.1} parent=0 // pred_check
    _
  $region15: #{bn_conv_forward.1} parent=0 // pred_check_branch
    %1832 = sbr.rel (0) target = $region17
  $region16: #{bn_conv_forward.1} parent=0 // pred_region
    _
  $region17: #{bn_conv_forward.1} parent=0 // pred_fallthru
    _
  // Predicated region
  $region18: #{bn_conv_forward.1} parent=0 // pred_check
    _
  $region19: #{bn_conv_forward.1} parent=0 // pred_check_branch
    %1834 = sbr.rel (0) target = $region21
  $region20: #{bn_conv_forward.1} parent=0 // pred_region
    _
  $region21: #{bn_conv_forward.1} parent=0 // pred_fallthru
    _

</llo_original>
